<compile_context>
chip_gen: v7x
topology: tpu7x:2x2x1
jax: 0.10.0
libtpu: 0.0.40
codegen_flags: <defaults>
</compile_context>

<pallas_src>
import functools

import numpy as np

import jax
import jax.numpy as jnp
from jax.experimental import pallas as pl
from jax.experimental.pallas import tpu as pltpu


# ---------------------------------------------------------------------------
# Static (shape-only) helper matrices, built with numpy at trace time.
# ---------------------------------------------------------------------------
def _interp_matrix(n_in, n_out):
    """U[a, i]: bilinear x-scale weights with align_corners=True (rows sum to 1)."""
    if n_in == 1:
        return np.ones((n_out, 1), np.float32)
    src = np.arange(n_out, dtype=np.float64) * (n_in - 1) / (n_out - 1)
    i0 = np.clip(np.floor(src).astype(np.int64), 0, n_in - 1)
    i1 = np.minimum(i0 + 1, n_in - 1)
    f = src - i0
    m = np.zeros((n_out, n_in), np.float64)
    m[np.arange(n_out), i0] += 1.0 - f
    m[np.arange(n_out), i1] += f
    return m.astype(np.float32)


def _shift_selector(w2):
    """S[kx, w', w] = 1 if w' == w + kx - 1 (zero-padded 3-tap band along W)."""
    s = np.zeros((3, w2, w2), np.float32)
    for kx in range(3):
        for w in range(w2):
            wp = w + kx - 1
            if 0 <= wp < w2:
                s[kx, wp, w] = 1.0
    return s


# ---------------------------------------------------------------------------
# Pallas kernel: upsample + conv/BN/ReLU x2, all on lane-dense (rows, W*C) slabs.
# ---------------------------------------------------------------------------
def _up_double_conv_kernel(x_ref, ah_ref, b1_ref, b2_ref, bn_ref, y_ref, *,
                           h2, cmid, cout, inv_count, eps):
    rows_total = ah_ref.shape[0]          # N * H2

    # ---- bilinear x2 along H (align_corners=True) as one dense matmul; the
    #      W-direction interpolation is folded into conv1's banded weights. ----
    p = jnp.dot(ah_ref[...], x_ref[...], preferred_element_type=jnp.float32)  # (N*H2, W*Cin)

    # Per-image vertical-edge masks: zero the taps that would cross image edges.
    # They also kill the rows wrapped around by pltpu.roll and stop leakage across
    # the stacked batch images.
    row_h = jax.lax.broadcasted_iota(jnp.int32, (rows_total, 1), 0) % h2
    not_first = (row_h != 0).astype(jnp.float32)          # h == 0      -> zero top tap
    not_last = (row_h != (h2 - 1)).astype(jnp.float32)    # h == H2 - 1 -> zero bottom tap

    def band_conv(rows, b_ref):
        # 3x3 conv as ONE long-K matmul: the 3 vertical taps are stacked along K and
        # the 3 horizontal taps + channel mixing live in the banded weight matrix.
        # Row shifts go through the XLU (pltpu.roll); wrapped rows are masked off.
        up = pltpu.roll(rows, 1, 0) * not_first                # row h sees input row h-1
        dn = pltpu.roll(rows, rows_total - 1, 0) * not_last    # row h sees input row h+1
        lhs = jnp.concatenate([up, rows, dn], axis=1)          # (rows, 3K)
        return jnp.dot(lhs, b_ref[...], preferred_element_type=jnp.float32)

    def bn_relu(act, c, g, beta):
        width = act.shape[-1]                                  # W2 * c
        # Single-pass batch statistics (biased variance, f32), fully lane-dense.
        rsum = jnp.sum(act, axis=0, keepdims=True)
        rssq = jnp.sum(act * act, axis=0, keepdims=True)
        # Channel gather / scatter selectors built in-registers (no DMA inputs).
        gi = jax.lax.broadcasted_iota(jnp.int32, (width, c), 0)
        gj = jax.lax.broadcasted_iota(jnp.int32, (width, c), 1)
        gather = ((gi % c) == gj).astype(jnp.float32)          # (width, c)
        cstats = jnp.dot(jnp.concatenate([rsum, rssq], axis=0), gather,
                         preferred_element_type=jnp.float32)   # (2, c)
        mean = cstats[0:1, :] * inv_count
        var = cstats[1:2, :] * inv_count - mean * mean
        s_c = g * jax.lax.rsqrt(var + eps)                     # (1, c)
        t_c = beta - mean * s_c
        si = jax.lax.broadcasted_iota(jnp.int32, (c, width), 0)
        sj = jax.lax.broadcasted_iota(jnp.int32, (c, width), 1)
        scatter = (si == (sj % c)).astype(jnp.float32)         # (c, width)
        aff = jnp.dot(jnp.concatenate([s_c, t_c], axis=0), scatter,
                      preferred_element_type=jnp.float32)      # (2, width)
        return jnp.maximum(act * aff[0:1, :] + aff[1:2, :], 0.0)

    bn = bn_ref[...]                                           # (4, Cmax)
    g1, be1 = bn[0:1, 0:cmid], bn[1:2, 0:cmid]
    g2, be2 = bn[2:3, 0:cout], bn[3:4, 0:cout]

    h1 = bn_relu(band_conv(p, b1_ref), cmid, g1, be1)
    out = bn_relu(band_conv(h1, b2_ref), cout, g2, be2)
    y_ref[...] = out.astype(y_ref.dtype)


# ---------------------------------------------------------------------------
# Public wrapper: NCHW in -> NCHW out.
# ---------------------------------------------------------------------------
@jax.jit
def up_forward(x_nchw, w1, w2, g1, b1, g2, b2):
    N, Cin, H, W = x_nchw.shape
    H2, W2 = 2 * H, 2 * W
    Cmid = w1.shape[-1]
    Cout = w2.shape[-1]
    Cmax = max(Cmid, Cout)

    # ---- static (shape-only) matrices ----
    u_h = _interp_matrix(H, H2)                                       # (H2, H)
    u_w = _interp_matrix(W, W2)                                       # (W2, W)
    a_h = np.kron(np.eye(N, dtype=np.float32), u_h)                   # (N*H2, N*H)
    r_w = np.einsum('bw,ij->wibj', u_w,
                    np.eye(Cin, dtype=np.float32)).reshape(W * Cin, W2 * Cin)
    s_sel = jnp.asarray(_shift_selector(W2))                          # (3, W2, W2)

    # ---- weight prep: fold the 3 horizontal taps + channel mixing into banded
    #      lane-mixing matrices (one per vertical tap ky), fold the W-upsample into
    #      conv1's bands, then stack the 3 ky taps along K (reshape is contiguous) ----
    b1m = jnp.einsum('kab,ykic->yaibc', s_sel,
                     w1.astype(jnp.float32)).reshape(3, W2 * Cin, W2 * Cmid)
    b1m = jnp.einsum('ab,ybc->yac', jnp.asarray(r_w), b1m)            # (3, W*Cin, W2*Cmid)
    b1s = b1m.reshape(3 * W * Cin, W2 * Cmid)
    b2m = jnp.einsum('kab,ykic->yaibc', s_sel,
                     w2.astype(jnp.float32)).reshape(3, W2 * Cmid, W2 * Cout)
    b2s = b2m.reshape(3 * W2 * Cmid, W2 * Cout)

    # ---- pack BN gamma/beta into a single small input ----
    bn_params = jnp.zeros((4, Cmax), jnp.float32)
    bn_params = bn_params.at[0, :Cmid].set(g1.reshape(-1).astype(jnp.float32))
    bn_params = bn_params.at[1, :Cmid].set(b1.reshape(-1).astype(jnp.float32))
    bn_params = bn_params.at[2, :Cout].set(g2.reshape(-1).astype(jnp.float32))
    bn_params = bn_params.at[3, :Cout].set(b2.reshape(-1).astype(jnp.float32))

    # ---- input packing: NCHW -> lane-dense slab (N*H, W*Cin) ----
    x2d = jnp.transpose(x_nchw.astype(jnp.float32),
                        (0, 2, 3, 1)).reshape(N * H, W * Cin)

    vmem = pl.BlockSpec(memory_space=pltpu.MemorySpace.VMEM)
    kernel = functools.partial(_up_double_conv_kernel, h2=H2, cmid=Cmid, cout=Cout,
                               inv_count=1.0 / float(N * H2 * W2), eps=1e-5)

    y2d = pl.pallas_call(
        kernel,
        out_shape=jax.ShapeDtypeStruct((N * H2, W2 * Cout), jnp.float32),
        in_specs=[vmem] * 5,
        out_specs=vmem,
        compiler_params=pltpu.CompilerParams(vmem_limit_bytes=32 * 1024 * 1024),
    )(x2d, jnp.asarray(a_h), b1s, b2s, bn_params)

    # lane-dense slab -> NCHW
    return y2d.reshape(N, H2, W2, Cout).transpose(0, 3, 1, 2)


# ---------------------------------------------------------------------------
# Pure-JAX reference (independent gather-based upsample + lax.conv) for checking.
# ---------------------------------------------------------------------------
def _bilinear_upsample_x2_align_corners(x):
    N, H, W, C = x.shape
    H2, W2 = 2 * H, 2 * W

    def coords(n_in, n_out):
        if n_in == 1:
            src = jnp.zeros((n_out,), jnp.float32)
        else:
            src = jnp.arange(n_out, dtype=jnp.float32) * (n_in - 1) / (n_out - 1)
        i0 = jnp.clip(jnp.floor(src).astype(jnp.int32), 0, n_in - 1)
        i1 = jnp.clip(i0 + 1, 0, n_in - 1)
        f = src - i0.astype(jnp.float32)
        return i0, i1, f

    h0, h1, hf = coords(H, H2)
    xh = (x[:, h0] * (1.0 - hf)[None, :, None, None]
          + x[:, h1] * hf[None, :, None, None])
    w0, w1, wf = coords(W, W2)
    return (xh[:, :, w0] * (1.0 - wf)[None, None, :, None]
            + xh[:, :, w1] * wf[None, None, :, None])


def _ref_forward(x_nchw, w1, w2, g1, b1, g2, b2):
    x = jnp.transpose(x_nchw, (0, 2, 3, 1)).astype(jnp.float32)
    xu = _bilinear_upsample_x2_align_corners(x)

    def conv_bn_relu(a, w, g, b):
        y = jax.lax.conv_general_dilated(
            a, w, window_strides=(1, 1), padding='SAME',
            dimension_numbers=('NHWC', 'HWIO', 'NHWC'))
        mean = jnp.mean(y, axis=(0, 1, 2), keepdims=True)
        var = jnp.mean(jnp.square(y - mean), axis=(0, 1, 2), keepdims=True)
        z = (y - mean) * jax.lax.rsqrt(var + 1e-5)
        z = z * g.reshape(1, 1, 1, -1) + b.reshape(1, 1, 1, -1)
        return jnp.maximum(z, 0.0)

    h = conv_bn_relu(xu, w1, g1, b1)
    o = conv_bn_relu(h, w2, g2, b2)
    return jnp.transpose(o, (0, 3, 1, 2))


if __name__ == "__main__":
    key = jax.random.PRNGKey(0)
    ks = jax.random.split(key, 7)

    # Module config: Up(in_channels=8, out_channels=8, bilinear=True)
    #   -> DoubleConv(in=4, out=8, mid=4); forward input has in_channels//2 = 4 channels.
    in_channels, out_channels = 8, 8
    cin = in_channels // 2
    cmid = in_channels // 2
    N, H, W = 2, 16, 16

    x = jax.random.normal(ks[0], (N, cin, H, W), jnp.float32)       # NCHW input

    # Deterministic synthetic parameters (conv weights in HWIO layout).
    w1 = 0.1 * jax.random.normal(ks[1], (3, 3, cin, cmid), jnp.float32)
    w2 = 0.1 * jax.random.normal(ks[2], (3, 3, cmid, out_channels), jnp.float32)
    g1 = 1.0 + 0.1 * jax.random.normal(ks[3], (1, cmid), jnp.float32)
    b1 = 0.1 * jax.random.normal(ks[4], (1, cmid), jnp.float32)
    g2 = 1.0 + 0.1 * jax.random.normal(ks[5], (1, out_channels), jnp.float32)
    b2 = 0.1 * jax.random.normal(ks[6], (1, out_channels), jnp.float32)

    y = up_forward(x, w1, w2, g1, b1, g2, b2)
    jax.block_until_ready(y)

    assert y.shape == (N, out_channels, 2 * H, 2 * W), y.shape
    y_ref = _ref_forward(x, w1, w2, g1, b1, g2, b2)
    assert jnp.allclose(y, y_ref, atol=1e-3, rtol=1e-3), float(jnp.max(jnp.abs(y - y_ref)))

    print("KERNEL_OK")
</pallas_src>

<mosaic_0001>
module attributes {stable_mosaic.version = 11 : i64} {
  func.func @_up_double_conv_kernel(%arg0: memref<32x64xf32, #tpu.memory_space<vmem>>, %arg1: memref<64x32xf32, #tpu.memory_space<vmem>>, %arg2: memref<192x128xf32, #tpu.memory_space<vmem>>, %arg3: memref<384x256xf32, #tpu.memory_space<vmem>>, %arg4: memref<4x8xf32, #tpu.memory_space<vmem>>, %arg5: memref<64x256xf32, #tpu.memory_space<vmem>>) attributes {dimension_semantics = [], scalar_prefetch = 0 : i64, scratch_operands = 0 : i64, tpu.core_type = #tpu.core_type<tc>} {
    %c0 = arith.constant 0 : index
    %c0_0 = arith.constant 0 : index
    %0 = vector.load %arg1[%c0, %c0_0] : memref<64x32xf32, #tpu.memory_space<vmem>>, vector<64x32xf32>
    %c0_1 = arith.constant 0 : index
    %c0_2 = arith.constant 0 : index
    %1 = vector.load %arg0[%c0_1, %c0_2] : memref<32x64xf32, #tpu.memory_space<vmem>>, vector<32x64xf32>
    %cst = arith.constant dense<0.000000e+00> : vector<64x64xf32>
    %2 = tpu.matmul %0, %1, %cst {dimension_numbers = #tpu.dot_dimension_numbers<[1], [0], [0], [1], [0, 0, 1, 1], [], []>} : vector<64x32xf32>, vector<32x64xf32>, vector<64x64xf32> -> vector<64x64xf32>
    %3 = tpu.iota {dimensions = array<i32: 0>} : vector<64x1xi32>
    %c32_i32 = arith.constant 32 : i32
    %c0_i32 = arith.constant 0 : i32
    %4 = arith.cmpi eq, %c32_i32, %c0_i32 : i32
    %c1_i32 = arith.constant 1 : i32
    %5 = arith.select %4, %c1_i32, %c32_i32 : i32
    %6 = vector.broadcast %5 : i32 to vector<64x1xi32>
    %7 = arith.remsi %3, %6 : vector<64x1xi32>
    %c0_i32_3 = arith.constant 0 : i32
    %8 = vector.broadcast %c0_i32_3 : i32 to vector<64x1xi32>
    %9 = arith.cmpi ne, %7, %8 : vector<64x1xi32>
    %c0_i32_4 = arith.constant 0 : i32
    %10 = vector.broadcast %c0_i32_4 : i32 to vector<64x1xi32>
    %11 = arith.cmpi slt, %7, %10 : vector<64x1xi32>
    %c0_i32_5 = arith.constant 0 : i32
    %12 = arith.cmpi slt, %5, %c0_i32_5 : i32
    %13 = vector.broadcast %12 : i1 to vector<64x1xi1>
    %14 = vector.broadcast %13 : vector<64x1xi1> to vector<64x1xi1>
    %15 = arith.xori %11, %14 : vector<64x1xi1>
    %16 = arith.andi %15, %9 : vector<64x1xi1>
    %17 = vector.broadcast %5 : i32 to vector<64x1xi32>
    %18 = arith.addi %7, %17 : vector<64x1xi32>
    %19 = arith.select %16, %18, %7 : vector<64x1xi1>, vector<64x1xi32>
    %c0_i32_6 = arith.constant 0 : i32
    %20 = vector.broadcast %c0_i32_6 : i32 to vector<64x1xi32>
    %21 = arith.cmpi ne, %19, %20 : vector<64x1xi32>
    %22 = arith.extui %21 : vector<64x1xi1> to vector<64x1xi32>
    %23 = arith.sitofp %22 : vector<64x1xi32> to vector<64x1xf32>
    %c31_i32 = arith.constant 31 : i32
    %24 = vector.broadcast %c31_i32 : i32 to vector<64x1xi32>
    %25 = arith.cmpi ne, %19, %24 : vector<64x1xi32>
    %26 = arith.extui %25 : vector<64x1xi1> to vector<64x1xi32>
    %27 = arith.sitofp %26 : vector<64x1xi32> to vector<64x1xf32>
    %c0_7 = arith.constant 0 : index
    %c0_8 = arith.constant 0 : index
    %28 = vector.load %arg4[%c0_7, %c0_8] : memref<4x8xf32, #tpu.memory_space<vmem>>, vector<4x8xf32>
    %29 = vector.extract_strided_slice %28 {offsets = [0, 0], sizes = [1, 4], strides = [1, 1]} : vector<4x8xf32> to vector<1x4xf32>
    %30 = vector.extract_strided_slice %28 {offsets = [1, 0], sizes = [1, 4], strides = [1, 1]} : vector<4x8xf32> to vector<1x4xf32>
    %31 = vector.extract_strided_slice %28 {offsets = [2, 0], sizes = [1, 8], strides = [1, 1]} : vector<4x8xf32> to vector<1x8xf32>
    %32 = vector.extract_strided_slice %28 {offsets = [3, 0], sizes = [1, 8], strides = [1, 1]} : vector<4x8xf32> to vector<1x8xf32>
    %c1_i32_9 = arith.constant 1 : i32
    %33 = tpu.dynamic_rotate %2 by %c1_i32_9 dim 0 : vector<64x64xf32>, i32 -> vector<64x64xf32>
    %34 = vector.broadcast %23 : vector<64x1xf32> to vector<64x64xf32>
    %35 = arith.mulf %33, %34 : vector<64x64xf32>
    %c63_i32 = arith.constant 63 : i32
    %36 = tpu.dynamic_rotate %2 by %c63_i32 dim 0 : vector<64x64xf32>, i32 -> vector<64x64xf32>
    %37 = vector.broadcast %27 : vector<64x1xf32> to vector<64x64xf32>
    %38 = arith.mulf %36, %37 : vector<64x64xf32>
    %39 = tpu.concatenate %35, %2, %38 in 1 : vector<64x64xf32>, vector<64x64xf32>, vector<64x64xf32> -> vector<64x192xf32>
    %c0_10 = arith.constant 0 : index
    %c0_11 = arith.constant 0 : index
    %40 = vector.load %arg2[%c0_10, %c0_11] : memref<192x128xf32, #tpu.memory_space<vmem>>, vector<192x128xf32>
    %cst_12 = arith.constant dense<0.000000e+00> : vector<64x128xf32>
    %41 = tpu.matmul %39, %40, %cst_12 {dimension_numbers = #tpu.dot_dimension_numbers<[1], [0], [0], [1], [0, 0, 1, 1], [], []>} : vector<64x192xf32>, vector<192x128xf32>, vector<64x128xf32> -> vector<64x128xf32>
    %cst_13 = arith.constant dense<0.000000e+00> : vector<128xf32>
    %42 = vector.multi_reduction <add>, %41, %cst_13 [0] : vector<64x128xf32> to vector<128xf32>
    %43 = vector.shape_cast %42 : vector<128xf32> to vector<1x128xf32>
    %44 = arith.mulf %41, %41 : vector<64x128xf32>
    %cst_14 = arith.constant dense<0.000000e+00> : vector<128xf32>
    %45 = vector.multi_reduction <add>, %44, %cst_14 [0] : vector<64x128xf32> to vector<128xf32>
    %46 = vector.shape_cast %45 : vector<128xf32> to vector<1x128xf32>
    %47 = tpu.iota {dimensions = array<i32: 0>} : vector<128x4xi32>
    %48 = tpu.iota {dimensions = array<i32: 1>} : vector<128x4xi32>
    %c4_i32 = arith.constant 4 : i32
    %c0_i32_15 = arith.constant 0 : i32
    %49 = arith.cmpi eq, %c4_i32, %c0_i32_15 : i32
    %c1_i32_16 = arith.constant 1 : i32
    %50 = arith.select %49, %c1_i32_16, %c4_i32 : i32
    %51 = vector.broadcast %50 : i32 to vector<128x4xi32>
    %52 = arith.remsi %47, %51 : vector<128x4xi32>
    %c0_i32_17 = arith.constant 0 : i32
    %53 = vector.broadcast %c0_i32_17 : i32 to vector<128x4xi32>
    %54 = arith.cmpi ne, %52, %53 : vector<128x4xi32>
    %c0_i32_18 = arith.constant 0 : i32
    %55 = vector.broadcast %c0_i32_18 : i32 to vector<128x4xi32>
    %56 = arith.cmpi slt, %52, %55 : vector<128x4xi32>
    %c0_i32_19 = arith.constant 0 : i32
    %57 = arith.cmpi slt, %50, %c0_i32_19 : i32
    %58 = vector.broadcast %57 : i1 to vector<128x4xi1>
    %59 = vector.broadcast %58 : vector<128x4xi1> to vector<128x4xi1>
    %60 = arith.xori %56, %59 : vector<128x4xi1>
    %61 = arith.andi %60, %54 : vector<128x4xi1>
    %62 = vector.broadcast %50 : i32 to vector<128x4xi32>
    %63 = arith.addi %52, %62 : vector<128x4xi32>
    %64 = arith.select %61, %63, %52 : vector<128x4xi1>, vector<128x4xi32>
    %65 = arith.cmpi eq, %64, %48 : vector<128x4xi32>
    %66 = arith.extui %65 : vector<128x4xi1> to vector<128x4xi32>
    %67 = arith.sitofp %66 : vector<128x4xi32> to vector<128x4xf32>
    %68 = tpu.concatenate %43, %46 in 0 : vector<1x128xf32>, vector<1x128xf32> -> vector<2x128xf32>
    %cst_20 = arith.constant dense<0.000000e+00> : vector<2x4xf32>
    %69 = tpu.matmul %68, %67, %cst_20 {dimension_numbers = #tpu.dot_dimension_numbers<[1], [0], [0], [1], [0, 0, 1, 1], [], []>} : vector<2x128xf32>, vector<128x4xf32>, vector<2x4xf32> -> vector<2x4xf32>
    %70 = vector.extract_strided_slice %69 {offsets = [0, 0], sizes = [1, 4], strides = [1, 1]} : vector<2x4xf32> to vector<1x4xf32>
    %cst_21 = arith.constant 4.8828125E-4 : f32
    %71 = vector.broadcast %cst_21 : f32 to vector<1x4xf32>
    %72 = arith.mulf %70, %71 : vector<1x4xf32>
    %73 = vector.extract_strided_slice %69 {offsets = [1, 0], sizes = [1, 4], strides = [1, 1]} : vector<2x4xf32> to vector<1x4xf32>
    %cst_22 = arith.constant 4.8828125E-4 : f32
    %74 = vector.broadcast %cst_22 : f32 to vector<1x4xf32>
    %75 = arith.mulf %73, %74 : vector<1x4xf32>
    %76 = arith.mulf %72, %72 : vector<1x4xf32>
    %77 = arith.subf %75, %76 : vector<1x4xf32>
    %cst_23 = arith.constant 9.99999974E-6 : f32
    %78 = vector.broadcast %cst_23 : f32 to vector<1x4xf32>
    %79 = arith.addf %77, %78 : vector<1x4xf32>
    %80 = math.rsqrt %79 : vector<1x4xf32>
    %81 = arith.mulf %29, %80 : vector<1x4xf32>
    %82 = arith.mulf %72, %81 : vector<1x4xf32>
    %83 = arith.subf %30, %82 : vector<1x4xf32>
    %84 = tpu.iota {dimensions = array<i32: 0>} : vector<4x128xi32>
    %85 = tpu.iota {dimensions = array<i32: 1>} : vector<4x128xi32>
    %c4_i32_24 = arith.constant 4 : i32
    %c0_i32_25 = arith.constant 0 : i32
    %86 = arith.cmpi eq, %c4_i32_24, %c0_i32_25 : i32
    %c1_i32_26 = arith.constant 1 : i32
    %87 = arith.select %86, %c1_i32_26, %c4_i32_24 : i32
    %88 = vector.broadcast %87 : i32 to vector<4x128xi32>
    %89 = arith.remsi %85, %88 : vector<4x128xi32>
    %c0_i32_27 = arith.constant 0 : i32
    %90 = vector.broadcast %c0_i32_27 : i32 to vector<4x128xi32>
    %91 = arith.cmpi ne, %89, %90 : vector<4x128xi32>
    %c0_i32_28 = arith.constant 0 : i32
    %92 = vector.broadcast %c0_i32_28 : i32 to vector<4x128xi32>
    %93 = arith.cmpi slt, %89, %92 : vector<4x128xi32>
    %c0_i32_29 = arith.constant 0 : i32
    %94 = arith.cmpi slt, %87, %c0_i32_29 : i32
    %95 = vector.broadcast %94 : i1 to vector<4x128xi1>
    %96 = vector.broadcast %95 : vector<4x128xi1> to vector<4x128xi1>
    %97 = arith.xori %93, %96 : vector<4x128xi1>
    %98 = arith.andi %97, %91 : vector<4x128xi1>
    %99 = vector.broadcast %87 : i32 to vector<4x128xi32>
    %100 = arith.addi %89, %99 : vector<4x128xi32>
    %101 = arith.select %98, %100, %89 : vector<4x128xi1>, vector<4x128xi32>
    %102 = arith.cmpi eq, %84, %101 : vector<4x128xi32>
    %103 = arith.extui %102 : vector<4x128xi1> to vector<4x128xi32>
    %104 = arith.sitofp %103 : vector<4x128xi32> to vector<4x128xf32>
    %105 = tpu.concatenate %81, %83 in 0 : vector<1x4xf32>, vector<1x4xf32> -> vector<2x4xf32>
    %cst_30 = arith.constant dense<0.000000e+00> : vector<2x128xf32>
    %106 = tpu.matmul %105, %104, %cst_30 {dimension_numbers = #tpu.dot_dimension_numbers<[1], [0], [0], [1], [0, 0, 1, 1], [], []>} : vector<2x4xf32>, vector<4x128xf32>, vector<2x128xf32> -> vector<2x128xf32>
    %107 = vector.extract_strided_slice %106 {offsets = [0, 0], sizes = [1, 128], strides = [1, 1]} : vector<2x128xf32> to vector<1x128xf32>
    %108 = vector.broadcast %107 : vector<1x128xf32> to vector<64x128xf32>
    %109 = arith.mulf %41, %108 : vector<64x128xf32>
    %110 = vector.extract_strided_slice %106 {offsets = [1, 0], sizes = [1, 128], strides = [1, 1]} : vector<2x128xf32> to vector<1x128xf32>
    %111 = vector.broadcast %110 : vector<1x128xf32> to vector<64x128xf32>
    %112 = arith.addf %109, %111 : vector<64x128xf32>
    %cst_31 = arith.constant 0.000000e+00 : f32
    %113 = vector.broadcast %cst_31 : f32 to vector<64x128xf32>
    %114 = arith.maximumf %112, %113 : vector<64x128xf32>
    %c1_i32_32 = arith.constant 1 : i32
    %115 = tpu.dynamic_rotate %114 by %c1_i32_32 dim 0 : vector<64x128xf32>, i32 -> vector<64x128xf32>
    %116 = vector.broadcast %23 : vector<64x1xf32> to vector<64x128xf32>
    %117 = arith.mulf %115, %116 : vector<64x128xf32>
    %c63_i32_33 = arith.constant 63 : i32
    %118 = tpu.dynamic_rotate %114 by %c63_i32_33 dim 0 : vector<64x128xf32>, i32 -> vector<64x128xf32>
    %119 = vector.broadcast %27 : vector<64x1xf32> to vector<64x128xf32>
    %120 = arith.mulf %118, %119 : vector<64x128xf32>
    %121 = tpu.concatenate %117, %114, %120 in 1 : vector<64x128xf32>, vector<64x128xf32>, vector<64x128xf32> -> vector<64x384xf32>
    %c0_34 = arith.constant 0 : index
    %c0_35 = arith.constant 0 : index
    %122 = vector.load %arg3[%c0_34, %c0_35] : memref<384x256xf32, #tpu.memory_space<vmem>>, vector<384x256xf32>
    %cst_36 = arith.constant dense<0.000000e+00> : vector<64x256xf32>
    %123 = tpu.matmul %121, %122, %cst_36 {dimension_numbers = #tpu.dot_dimension_numbers<[1], [0], [0], [1], [0, 0, 1, 1], [], []>} : vector<64x384xf32>, vector<384x256xf32>, vector<64x256xf32> -> vector<64x256xf32>
    %cst_37 = arith.constant dense<0.000000e+00> : vector<256xf32>
    %124 = vector.multi_reduction <add>, %123, %cst_37 [0] : vector<64x256xf32> to vector<256xf32>
    %125 = vector.shape_cast %124 : vector<256xf32> to vector<1x256xf32>
    %126 = arith.mulf %123, %123 : vector<64x256xf32>
    %cst_38 = arith.constant dense<0.000000e+00> : vector<256xf32>
    %127 = vector.multi_reduction <add>, %126, %cst_38 [0] : vector<64x256xf32> to vector<256xf32>
    %128 = vector.shape_cast %127 : vector<256xf32> to vector<1x256xf32>
    %129 = tpu.iota {dimensions = array<i32: 0>} : vector<256x8xi32>
    %130 = tpu.iota {dimensions = array<i32: 1>} : vector<256x8xi32>
    %c8_i32 = arith.constant 8 : i32
    %c0_i32_39 = arith.constant 0 : i32
    %131 = arith.cmpi eq, %c8_i32, %c0_i32_39 : i32
    %c1_i32_40 = arith.constant 1 : i32
    %132 = arith.select %131, %c1_i32_40, %c8_i32 : i32
    %133 = vector.broadcast %132 : i32 to vector<256x8xi32>
    %134 = arith.remsi %129, %133 : vector<256x8xi32>
    %c0_i32_41 = arith.constant 0 : i32
    %135 = vector.broadcast %c0_i32_41 : i32 to vector<256x8xi32>
    %136 = arith.cmpi ne, %134, %135 : vector<256x8xi32>
    %c0_i32_42 = arith.constant 0 : i32
    %137 = vector.broadcast %c0_i32_42 : i32 to vector<256x8xi32>
    %138 = arith.cmpi slt, %134, %137 : vector<256x8xi32>
    %c0_i32_43 = arith.constant 0 : i32
    %139 = arith.cmpi slt, %132, %c0_i32_43 : i32
    %140 = vector.broadcast %139 : i1 to vector<256x8xi1>
    %141 = vector.broadcast %140 : vector<256x8xi1> to vector<256x8xi1>
    %142 = arith.xori %138, %141 : vector<256x8xi1>
    %143 = arith.andi %142, %136 : vector<256x8xi1>
    %144 = vector.broadcast %132 : i32 to vector<256x8xi32>
    %145 = arith.addi %134, %144 : vector<256x8xi32>
    %146 = arith.select %143, %145, %134 : vector<256x8xi1>, vector<256x8xi32>
    %147 = arith.cmpi eq, %146, %130 : vector<256x8xi32>
    %148 = arith.extui %147 : vector<256x8xi1> to vector<256x8xi32>
    %149 = arith.sitofp %148 : vector<256x8xi32> to vector<256x8xf32>
    %150 = tpu.concatenate %125, %128 in 0 : vector<1x256xf32>, vector<1x256xf32> -> vector<2x256xf32>
    %cst_44 = arith.constant dense<0.000000e+00> : vector<2x8xf32>
    %151 = tpu.matmul %150, %149, %cst_44 {dimension_numbers = #tpu.dot_dimension_numbers<[1], [0], [0], [1], [0, 0, 1, 1], [], []>} : vector<2x256xf32>, vector<256x8xf32>, vector<2x8xf32> -> vector<2x8xf32>
    %152 = vector.extract_strided_slice %151 {offsets = [0, 0], sizes = [1, 8], strides = [1, 1]} : vector<2x8xf32> to vector<1x8xf32>
    %cst_45 = arith.constant 4.8828125E-4 : f32
    %153 = vector.broadcast %cst_45 : f32 to vector<1x8xf32>
    %154 = arith.mulf %152, %153 : vector<1x8xf32>
    %155 = vector.extract_strided_slice %151 {offsets = [1, 0], sizes = [1, 8], strides = [1, 1]} : vector<2x8xf32> to vector<1x8xf32>
    %cst_46 = arith.constant 4.8828125E-4 : f32
    %156 = vector.broadcast %cst_46 : f32 to vector<1x8xf32>
    %157 = arith.mulf %155, %156 : vector<1x8xf32>
    %158 = arith.mulf %154, %154 : vector<1x8xf32>
    %159 = arith.subf %157, %158 : vector<1x8xf32>
    %cst_47 = arith.constant 9.99999974E-6 : f32
    %160 = vector.broadcast %cst_47 : f32 to vector<1x8xf32>
    %161 = arith.addf %159, %160 : vector<1x8xf32>
    %162 = math.rsqrt %161 : vector<1x8xf32>
    %163 = arith.mulf %31, %162 : vector<1x8xf32>
    %164 = arith.mulf %154, %163 : vector<1x8xf32>
    %165 = arith.subf %32, %164 : vector<1x8xf32>
    %166 = tpu.iota {dimensions = array<i32: 0>} : vector<8x256xi32>
    %167 = tpu.iota {dimensions = array<i32: 1>} : vector<8x256xi32>
    %c8_i32_48 = arith.constant 8 : i32
    %c0_i32_49 = arith.constant 0 : i32
    %168 = arith.cmpi eq, %c8_i32_48, %c0_i32_49 : i32
    %c1_i32_50 = arith.constant 1 : i32
    %169 = arith.select %168, %c1_i32_50, %c8_i32_48 : i32
    %170 = vector.broadcast %169 : i32 to vector<8x256xi32>
    %171 = arith.remsi %167, %170 : vector<8x256xi32>
    %c0_i32_51 = arith.constant 0 : i32
    %172 = vector.broadcast %c0_i32_51 : i32 to vector<8x256xi32>
    %173 = arith.cmpi ne, %171, %172 : vector<8x256xi32>
    %c0_i32_52 = arith.constant 0 : i32
    %174 = vector.broadcast %c0_i32_52 : i32 to vector<8x256xi32>
    %175 = arith.cmpi slt, %171, %174 : vector<8x256xi32>
    %c0_i32_53 = arith.constant 0 : i32
    %176 = arith.cmpi slt, %169, %c0_i32_53 : i32
    %177 = vector.broadcast %176 : i1 to vector<8x256xi1>
    %178 = vector.broadcast %177 : vector<8x256xi1> to vector<8x256xi1>
    %179 = arith.xori %175, %178 : vector<8x256xi1>
    %180 = arith.andi %179, %173 : vector<8x256xi1>
    %181 = vector.broadcast %169 : i32 to vector<8x256xi32>
    %182 = arith.addi %171, %181 : vector<8x256xi32>
    %183 = arith.select %180, %182, %171 : vector<8x256xi1>, vector<8x256xi32>
    %184 = arith.cmpi eq, %166, %183 : vector<8x256xi32>
    %185 = arith.extui %184 : vector<8x256xi1> to vector<8x256xi32>
    %186 = arith.sitofp %185 : vector<8x256xi32> to vector<8x256xf32>
    %187 = tpu.concatenate %163, %165 in 0 : vector<1x8xf32>, vector<1x8xf32> -> vector<2x8xf32>
    %cst_54 = arith.constant dense<0.000000e+00> : vector<2x256xf32>
    %188 = tpu.matmul %187, %186, %cst_54 {dimension_numbers = #tpu.dot_dimension_numbers<[1], [0], [0], [1], [0, 0, 1, 1], [], []>} : vector<2x8xf32>, vector<8x256xf32>, vector<2x256xf32> -> vector<2x256xf32>
    %189 = vector.extract_strided_slice %188 {offsets = [0, 0], sizes = [1, 256], strides = [1, 1]} : vector<2x256xf32> to vector<1x256xf32>
    %190 = vector.broadcast %189 : vector<1x256xf32> to vector<64x256xf32>
    %191 = arith.mulf %123, %190 : vector<64x256xf32>
    %192 = vector.extract_strided_slice %188 {offsets = [1, 0], sizes = [1, 256], strides = [1, 1]} : vector<2x256xf32> to vector<1x256xf32>
    %193 = vector.broadcast %192 : vector<1x256xf32> to vector<64x256xf32>
    %194 = arith.addf %191, %193 : vector<64x256xf32>
    %cst_55 = arith.constant 0.000000e+00 : f32
    %195 = vector.broadcast %cst_55 : f32 to vector<64x256xf32>
    %196 = arith.maximumf %194, %195 : vector<64x256xf32>
    %c0_56 = arith.constant 0 : index
    %c0_57 = arith.constant 0 : index
    %197 = vector.load %arg5[%c0_56, %c0_57] : memref<64x256xf32, #tpu.memory_space<vmem>>, vector<64x256xf32>
    tpu.vector_store %arg5[%c0_56, %c0_57], %196 {strides = array<i32>} : memref<64x256xf32, #tpu.memory_space<vmem>>, vector<64x256xf32>,
    return
  }
}

</mosaic_0001>

<llo_original>
// kernel: up_forward.1
$region0: #{up_forward.1}
  #allocation0 [shape = 'u32[]', space=smem, size = 0x4, offset = 0x4, fixed_abs, tag = 'smem constant byte address 0x4 - core index']
  #allocation1 [shape = 'u32[144,128]{1,0:T(1,128)}', space=vmem, size = 0x12000, scoped, tag = 'internal scratch']
  %s0 = inlined_call_operand.vmem [shape: f32[32,64], index: 0, kind: input, shape index: {}]
  %s1 = inlined_call_operand.vmem [shape: f32[64,32], index: 1, kind: input, shape index: {}]
  %s2 = inlined_call_operand.vmem [shape: f32[192,128], index: 2, kind: input, shape index: {}]
  %s3 = inlined_call_operand.vmem [shape: f32[384,256], index: 3, kind: input, shape index: {}]
  %s4 = inlined_call_operand.vmem [shape: f32[4,8], index: 4, kind: input, shape index: {}]
  %s5 = inlined_call_operand.vmem [shape: f32[64,256], index: 5, kind: output, shape index: {}]
  %s6 = sld [smem:[#allocation0]]
  $region30: #{up_forward.1} parent=0
    _
  %s8 = ssub.s32 1, %s6
  %s9 = scalar_select 0, %s8, %s6
  // Predicated region
  $region2: #{up_forward.1} parent=0 // pred_check
    _
  $region3: #{up_forward.1} parent=0 // pred_check_branch
    %11 = sbr.rel (0) target = $region5
  $region4: #{up_forward.1} parent=0 // pred_region
    _
  $region5: #{up_forward.1} parent=0 // pred_fallthru
    _
  // Predicated region
  $region6: #{up_forward.1} parent=0 // pred_check
    _
  $region7: #{up_forward.1} parent=0 // pred_check_branch
    %13 = sbr.rel (0) target = $region9
  $region8: #{up_forward.1} parent=0 // pred_region
    _
  $region9: #{up_forward.1} parent=0 // pred_fallthru
    _
  // Predicated region
  $region10: #{up_forward.1} parent=0 // pred_check
    _
  $region11: #{up_forward.1} parent=0 // pred_check_branch
    %15 = sbr.rel (0) target = $region13
  $region12: #{up_forward.1} parent=0 // pred_region
    _
  $region13: #{up_forward.1} parent=0 // pred_fallthru
    _
  // Predicated region
  $region14: #{up_forward.1} parent=0 // pred_check
    _
  $region15: #{up_forward.1} parent=0 // pred_check_branch
    %17 = sbr.rel (0) target = $region17
  $region16: #{up_forward.1} parent=0 // pred_region
    _
  $region17: #{up_forward.1} parent=0 // pred_fallthru
    _
  // Predicated region
  $region18: #{up_forward.1} parent=0 // pred_check
    _
  $region19: #{up_forward.1} parent=0 // pred_check_branch
    %19 = sbr.rel (0) target = $region21
  $region20: #{up_forward.1} parent=0 // pred_region
    _
  $region21: #{up_forward.1} parent=0 // pred_fallthru
    _
  %v20 = vld [vmem:[%s1] sm:$0xff]
  %v21 = vld [vmem:[%s1 + $0x8] sm:$0xff]
  %v22 = vld [vmem:[%s1 + $0x10] sm:$0xff]
  %v23 = vld [vmem:[%s1 + $0x18] sm:$0xff]
  %v24 = vld [vmem:[%s1 + $0x20] sm:$0xff]
  %v25 = vld [vmem:[%s1 + $0x28] sm:$0xff]
  %v26 = vld [vmem:[%s1 + $0x30] sm:$0xff]
  %v27 = vld [vmem:[%s1 + $0x38] sm:$0xff]
  %v28 = vld [vmem:[%s0] sm:$0xff]
  %v29 = vld [vmem:[%s0 + $0x8] sm:$0xff]
  %v30 = vld [vmem:[%s0 + $0x10] sm:$0xff]
  %v31 = vld [vmem:[%s0 + $0x18] sm:$0xff]
  %vm32 = vcmask 261120
  %v34 = vsel %vm32, %v20, 0
  %v37 = vsel %vm32, %v21, 0
  %v40 = vsel %vm32, %v22, 0
  %v43 = vsel %vm32, %v23, 0
  %v46 = vsel %vm32, %v24, 0
  %v49 = vsel %vm32, %v25, 0
  %v52 = vsel %vm32, %v26, 0
  %v55 = vsel %vm32, %v27, 0
  %57 = vmatprep.subr.mxu0 0.0
  %58 = vmatpush1.msra.mxu0 %v28
  %59 = vmatprep.subr.mxu0 0.0
  %60 = vmatpush1.msra.mxu0 %v29
  %61 = vmatprep.subr.mxu0 0.0
  %62 = vmatpush1.msra.mxu0 %v30
  %63 = vmatprep.subr.mxu0 0.0
  %64 = vmatpush1.msra.mxu0 %v31
  %65 = vmatprep.subr.mxu0 0.0
  %66 = vmatpush1.msra.mxu0 0.0
  %67 = vmatprep.subr.mxu0 0.0
  %68 = vmatpush1.msra.mxu0 0.0
  %69 = vmatprep.subr.mxu0 0.0
  %70 = vmatpush1.msra.mxu0 0.0
  %71 = vmatprep.subr.mxu0 0.0
  %72 = vmatpush1.msra.mxu0 0.0
  %73 = vmatprep.subr.mxu0 0.0
  %74 = vmatpush1.msra.mxu0 0.0
  %75 = vmatprep.subr.mxu0 0.0
  %76 = vmatpush1.msra.mxu0 0.0
  %77 = vmatprep.subr.mxu0 0.0
  %78 = vmatpush1.msra.mxu0 0.0
  %79 = vmatprep.subr.mxu0 0.0
  %80 = vmatpush1.msra.mxu0 0.0
  %81 = vmatprep.subr.mxu0 0.0
  %82 = vmatpush1.msra.mxu0 0.0
  %83 = vmatprep.subr.mxu0 0.0
  %84 = vmatpush1.msra.mxu0 0.0
  %85 = vmatprep.subr.mxu0 0.0
  %86 = vmatpush1.msra.mxu0 0.0
  %87 = vmatprep.subr.mxu0 0.0
  %88 = vmatpush1.msra.mxu0 0.0
  %89 = vmatprep.subr.mxu0 0.0
  %90 = vmatpush1.msra.mxu0 0.0
  %91 = vmatprep.subr.mxu0 0.0
  %92 = vmatpush1.msra.mxu0 0.0
  %93 = vmatprep.subr.mxu0 0.0
  %94 = vmatpush1.msra.mxu0 0.0
  %95 = vmatprep.subr.mxu0 0.0
  %96 = vmatpush1.msra.mxu0 0.0
  %97 = vmatprep.subr.mxu0 0.0
  %98 = vmatpush1.msra.mxu0 0.0
  %99 = vmatprep.subr.mxu0 0.0
  %100 = vmatpush1.msra.mxu0 0.0
  %101 = vmatprep.subr.mxu0 0.0
  %102 = vmatpush1.msra.mxu0 0.0
  %103 = vmatprep.subr.mxu0 0.0
  %104 = vmatpush1.msra.mxu0 0.0
  %105 = vmatprep.subr.mxu0 0.0
  %106 = vmatpush1.msra.mxu0 0.0
  %107 = vmatprep.subr.mxu0 0.0
  %108 = vmatpush1.msra.mxu0 0.0
  %109 = vmatprep.subr.mxu0 0.0
  %110 = vmatpush1.msra.mxu0 0.0
  %111 = vmatprep.subr.mxu0 0.0
  %112 = vmatpush1.msra.mxu0 0.0
  %113 = vmatprep.subr.mxu0 0.0
  %114 = vmatpush1.msra.mxu0 0.0
  %115 = vmatprep.subr.mxu0 0.0
  %116 = vmatpush1.msra.mxu0 0.0
  %117 = vmatprep.subr.mxu0 0.0
  %118 = vmatpush1.msra.mxu0 0.0
  %119 = vmatprep.subr.mxu0 0.0
  %120 = vmatpush1.msra.mxu0 0.0
  %121 = vmatprep.mubr.f32.mxu0 0.0
  %122 = vmatmul.mubr.f32.gmra.mrb[0].mxu0 %v34
  %v123 = vpop.f32.mrb[0].mxu0
  %v124 = vadd.f32 0.0, %v123
  %v125 = vpop.f32.mrb[0].mxu0
  %126 = vmatprep.mubr.f32.mxu0 0.0
  %127 = vmatmul.mubr.f32.gmra.mrb[0].mxu0 %v37
  %v128 = vpop.f32.mrb[0].mxu0
  %v129 = vadd.f32 0.0, %v128
  %v130 = vpop.f32.mrb[0].mxu0
  %131 = vmatprep.mubr.f32.mxu0 0.0
  %132 = vmatmul.mubr.f32.gmra.mrb[0].mxu0 %v40
  %v133 = vpop.f32.mrb[0].mxu0
  %v134 = vadd.f32 0.0, %v133
  %v135 = vpop.f32.mrb[0].mxu0
  %136 = vmatprep.mubr.f32.mxu0 0.0
  %137 = vmatmul.mubr.f32.gmra.mrb[0].mxu0 %v43
  %v138 = vpop.f32.mrb[0].mxu0
  %v139 = vadd.f32 0.0, %v138
  %v140 = vpop.f32.mrb[0].mxu0
  %141 = vmatprep.mubr.f32.mxu0 0.0
  %142 = vmatmul.mubr.f32.gmra.mrb[0].mxu0 %v46
  %v143 = vpop.f32.mrb[0].mxu0
  %v144 = vadd.f32 0.0, %v143
  %v145 = vpop.f32.mrb[0].mxu0
  %146 = vmatprep.mubr.f32.mxu0 0.0
  %147 = vmatmul.mubr.f32.gmra.mrb[0].mxu0 %v49
  %v148 = vpop.f32.mrb[0].mxu0
  %v149 = vadd.f32 0.0, %v148
  %v150 = vpop.f32.mrb[0].mxu0
  %151 = vmatprep.mubr.f32.mxu0 0.0
  %152 = vmatmul.mubr.f32.gmra.mrb[0].mxu0 %v52
  %v153 = vpop.f32.mrb[0].mxu0
  %v154 = vadd.f32 0.0, %v153
  %v155 = vpop.f32.mrb[0].mxu0
  %156 = vmatprep.mubr.f32.mxu0 0.0
  %157 = vmatmul.mubr.f32.gmra.mrb[0].mxu0 %v55
  %v158 = vpop.f32.mrb[0].mxu0
  %v159 = vadd.f32 0.0, %v158
  %v160 = vpop.f32.mrb[0].mxu0
  %161 = vdwg.mxu0
  %v162 = vlaneseq
  %v163 = vshrl.u32 %v162, 7
  %v164 = vadd.s32 %v163, 8
  %v165 = vadd.s32 %v163, 16
  %v166 = vadd.s32 %v163, 24
  %v167 = vadd.s32 %v163, 32
  %v168 = vadd.s32 %v163, 40
  %v169 = vadd.s32 %v163, 48
  %v170 = vadd.s32 %v163, 56
  %vm171 = vcmp.lt.s32.totalorder %v163, 0
  %v172 = vsub.s32 0, %v163
  %v173 = vsel %vm171, %v172, %v163
  %v174 = vshrl.u32 %v173, 5
  %v175 = vand.u32 %v173, 31
  %v176 = vsub.s32 0, %v175
  %v177 = vsel %vm171, %v176, %v175
  %vm178 = vcmp.lt.s32.totalorder %v164, 0
  %v179 = vsub.s32 0, %v164
  %v180 = vsel %vm178, %v179, %v164
  %v181 = vshrl.u32 %v180, 5
  %v182 = vand.u32 %v180, 31
  %v183 = vsub.s32 0, %v182
  %v184 = vsel %vm178, %v183, %v182
  %vm185 = vcmp.lt.s32.totalorder %v165, 0
  %v186 = vsub.s32 0, %v165
  %v187 = vsel %vm185, %v186, %v165
  %v188 = vshrl.u32 %v187, 5
  %v189 = vand.u32 %v187, 31
  %v190 = vsub.s32 0, %v189
  %v191 = vsel %vm185, %v190, %v189
  %vm192 = vcmp.lt.s32.totalorder %v166, 0
  %v193 = vsub.s32 0, %v166
  %v194 = vsel %vm192, %v193, %v166
  %v195 = vshrl.u32 %v194, 5
  %v196 = vand.u32 %v194, 31
  %v197 = vsub.s32 0, %v196
  %v198 = vsel %vm192, %v197, %v196
  %vm199 = vcmp.lt.s32.totalorder %v167, 0
  %v200 = vsub.s32 0, %v167
  %v201 = vsel %vm199, %v200, %v167
  %v202 = vshrl.u32 %v201, 5
  %v203 = vand.u32 %v201, 31
  %v204 = vsub.s32 0, %v203
  %v205 = vsel %vm199, %v204, %v203
  %vm206 = vcmp.lt.s32.totalorder %v168, 0
  %v207 = vsub.s32 0, %v168
  %v208 = vsel %vm206, %v207, %v168
  %v209 = vshrl.u32 %v208, 5
  %v210 = vand.u32 %v208, 31
  %v211 = vsub.s32 0, %v210
  %v212 = vsel %vm206, %v211, %v210
  %vm213 = vcmp.lt.s32.totalorder %v169, 0
  %v214 = vsub.s32 0, %v169
  %v215 = vsel %vm213, %v214, %v169
  %v216 = vshrl.u32 %v215, 5
  %v217 = vand.u32 %v215, 31
  %v218 = vsub.s32 0, %v217
  %v219 = vsel %vm213, %v218, %v217
  %vm220 = vcmp.lt.s32.totalorder %v170, 0
  %v221 = vsub.s32 0, %v170
  %v222 = vsel %vm220, %v221, %v170
  %v223 = vshrl.u32 %v222, 5
  %v224 = vand.u32 %v222, 31
  %v225 = vsub.s32 0, %v224
  %v226 = vsel %vm220, %v225, %v224
  %vm227 = vcmp.ne.s32.totalorder %v177, 0
  %vm228 = vcmp.ne.s32.totalorder %v184, 0
  %vm229 = vcmp.ne.s32.totalorder %v191, 0
  %vm230 = vcmp.ne.s32.totalorder %v198, 0
  %vm231 = vcmp.ne.s32.totalorder %v205, 0
  %vm232 = vcmp.ne.s32.totalorder %v212, 0
  %vm233 = vcmp.ne.s32.totalorder %v219, 0
  %vm234 = vcmp.ne.s32.totalorder %v226, 0
  %vm235 = vcmp.lt.s32.totalorder %v177, 0
  %vm236 = vcmp.lt.s32.totalorder %v184, 0
  %vm237 = vcmp.lt.s32.totalorder %v191, 0
  %vm238 = vcmp.lt.s32.totalorder %v198, 0
  %vm239 = vcmp.lt.s32.totalorder %v205, 0
  %vm240 = vcmp.lt.s32.totalorder %v212, 0
  %vm241 = vcmp.lt.s32.totalorder %v219, 0
  %vm242 = vcmp.lt.s32.totalorder %v226, 0
  %vm243 = vmand %vm235, %vm227
  %vm244 = vmand %vm236, %vm228
  %vm245 = vmand %vm237, %vm229
  %vm246 = vmand %vm238, %vm230
  %vm247 = vmand %vm239, %vm231
  %vm248 = vmand %vm240, %vm232
  %vm249 = vmand %vm241, %vm233
  %vm250 = vmand %vm242, %vm234
  %v251 = vadd.s32 %v177, 32
  %v252 = vadd.s32 %v184, 32
  %v253 = vadd.s32 %v191, 32
  %v254 = vadd.s32 %v198, 32
  %v255 = vadd.s32 %v205, 32
  %v256 = vadd.s32 %v212, 32
  %v257 = vadd.s32 %v219, 32
  %v258 = vadd.s32 %v226, 32
  %v259 = vsel %vm243, %v251, %v177
  %v260 = vsel %vm244, %v252, %v184
  %v261 = vsel %vm245, %v253, %v191
  %v262 = vsel %vm246, %v254, %v198
  %v263 = vsel %vm247, %v255, %v205
  %v264 = vsel %vm248, %v256, %v212
  %v265 = vsel %vm249, %v257, %v219
  %v266 = vsel %vm250, %v258, %v226
  %vm267 = vcmp.ne.s32.totalorder %v259, 0
  %vm268 = vcmp.ne.s32.totalorder %v260, 0
  %vm269 = vcmp.ne.s32.totalorder %v261, 0
  %vm270 = vcmp.ne.s32.totalorder %v262, 0
  %vm271 = vcmp.ne.s32.totalorder %v263, 0
  %vm272 = vcmp.ne.s32.totalorder %v264, 0
  %vm273 = vcmp.ne.s32.totalorder %v265, 0
  %vm274 = vcmp.ne.s32.totalorder %v266, 0
  %v275 = vsel %vm267, 1, 0
  %v276 = vsel %vm268, 1, 0
  %v277 = vsel %vm269, 1, 0
  %v278 = vsel %vm270, 1, 0
  %v279 = vsel %vm271, 1, 0
  %v280 = vsel %vm272, 1, 0
  %v281 = vsel %vm273, 1, 0
  %v282 = vsel %vm274, 1, 0
  %v283 = vcvt.s32.f32 %v275
  %v284 = vcvt.s32.f32 %v276
  %v285 = vcvt.s32.f32 %v277
  %v286 = vcvt.s32.f32 %v278
  %v287 = vcvt.s32.f32 %v279
  %v288 = vcvt.s32.f32 %v280
  %v289 = vcvt.s32.f32 %v281
  %v290 = vcvt.s32.f32 %v282
  %vm291 = vcmp.ne.s32.totalorder %v259, 31
  %vm292 = vcmp.ne.s32.totalorder %v260, 31
  %vm293 = vcmp.ne.s32.totalorder %v261, 31
  %vm294 = vcmp.ne.s32.totalorder %v262, 31
  %vm295 = vcmp.ne.s32.totalorder %v263, 31
  %vm296 = vcmp.ne.s32.totalorder %v264, 31
  %vm297 = vcmp.ne.s32.totalorder %v265, 31
  %vm298 = vcmp.ne.s32.totalorder %v266, 31
  %v299 = vsel %vm291, 1, 0
  %v300 = vsel %vm292, 1, 0
  %v301 = vsel %vm293, 1, 0
  %v302 = vsel %vm294, 1, 0
  %v303 = vsel %vm295, 1, 0
  %v304 = vsel %vm296, 1, 0
  %v305 = vsel %vm297, 1, 0
  %v306 = vsel %vm298, 1, 0
  %v307 = vcvt.s32.f32 %v299
  %v308 = vcvt.s32.f32 %v300
  %v309 = vcvt.s32.f32 %v301
  %v310 = vcvt.s32.f32 %v302
  %v311 = vcvt.s32.f32 %v303
  %v312 = vcvt.s32.f32 %v304
  %v313 = vcvt.s32.f32 %v305
  %v314 = vcvt.s32.f32 %v306
  %v315 = vld [vmem:[%s4] sm:$0xf]
  %v316 = vrot.slane %v124, 7
  %v317 = vrot.slane %v129, 7
  %v318 = vrot.slane %v134, 7
  %v319 = vrot.slane %v139, 7
  %v320 = vrot.slane %v144, 7
  %v321 = vrot.slane %v149, 7
  %v322 = vrot.slane %v154, 7
  %v323 = vrot.slane %v159, 7
  %vm324 = vcmp.lt.s32.totalorder %v163, 1
  %v325 = vsel %vm324, %v322, %v323
  %v326 = vsel %vm324, %v321, %v322
  %v327 = vsel %vm324, %v320, %v321
  %v328 = vsel %vm324, %v319, %v320
  %v329 = vsel %vm324, %v318, %v319
  %v330 = vsel %vm324, %v317, %v318
  %v331 = vsel %vm324, %v316, %v317
  %v332 = vsel %vm324, %v323, %v316
  %v333 = vmul.f32 %v332, %v283
  %v334 = vmul.f32 %v331, %v284
  %v335 = vmul.f32 %v330, %v285
  %v336 = vmul.f32 %v329, %v286
  %v337 = vmul.f32 %v328, %v287
  %v338 = vmul.f32 %v327, %v288
  %v339 = vmul.f32 %v326, %v289
  %v340 = vmul.f32 %v325, %v290
  %v341 = vrot.slane %v124, 1
  %v342 = vrot.slane %v129, 1
  %v343 = vrot.slane %v134, 1
  %v344 = vrot.slane %v139, 1
  %v345 = vrot.slane %v144, 1
  %v346 = vrot.slane %v149, 1
  %v347 = vrot.slane %v154, 1
  %v348 = vrot.slane %v159, 1
  %vm349 = vcmp.lt.s32.totalorder %v163, 7
  %v350 = vsel %vm349, %v347, %v348
  %v351 = vsel %vm349, %v346, %v347
  %v352 = vsel %vm349, %v345, %v346
  %v353 = vsel %vm349, %v344, %v345
  %v354 = vsel %vm349, %v343, %v344
  %v355 = vsel %vm349, %v342, %v343
  %v356 = vsel %vm349, %v341, %v342
  %v357 = vsel %vm349, %v348, %v341
  %v358 = vmul.f32 %v356, %v307
  %v359 = vmul.f32 %v355, %v308
  %v360 = vmul.f32 %v354, %v309
  %v361 = vmul.f32 %v353, %v310
  %v362 = vmul.f32 %v352, %v311
  %v363 = vmul.f32 %v351, %v312
  %v364 = vmul.f32 %v350, %v313
  %v365 = vmul.f32 %v357, %v314
  %374 = vrot.lane.b32.xlu0 %v124, 64
  %v375 = vpop.permute.xlu0 %374
  %376 = vrot.lane.b32.xlu0 %v129, 64
  %v377 = vpop.permute.xlu0 %376
  %378 = vrot.lane.b32.xlu0 %v134, 64
  %v379 = vpop.permute.xlu0 %378
  %380 = vrot.lane.b32.xlu0 %v139, 64
  %v381 = vpop.permute.xlu0 %380
  %382 = vrot.lane.b32.xlu0 %v144, 64
  %v383 = vpop.permute.xlu0 %382
  %384 = vrot.lane.b32.xlu0 %v149, 64
  %v385 = vpop.permute.xlu0 %384
  %386 = vrot.lane.b32.xlu0 %v154, 64
  %v387 = vpop.permute.xlu0 %386
  %388 = vrot.lane.b32.xlu0 %v159, 64
  %v389 = vpop.permute.xlu0 %388
  %vm398 = vcmask 523264
  %v399 = vsel %vm398, %v333, %v375
  %v400 = vsel %vm398, %v334, %v377
  %v401 = vsel %vm398, %v335, %v379
  %v402 = vsel %vm398, %v336, %v381
  %v403 = vsel %vm398, %v337, %v383
  %v404 = vsel %vm398, %v338, %v385
  %v405 = vsel %vm398, %v339, %v387
  %v406 = vsel %vm398, %v340, %v389
  %v407 = vld [vmem:[%s2] sm:$0xff]
  %v408 = vld [vmem:[%s2 + $0x8] sm:$0xff]
  %v409 = vld [vmem:[%s2 + $0x10] sm:$0xff]
  %v410 = vld [vmem:[%s2 + $0x18] sm:$0xff]
  %v411 = vld [vmem:[%s2 + $0x20] sm:$0xff]
  %v412 = vld [vmem:[%s2 + $0x28] sm:$0xff]
  %v413 = vld [vmem:[%s2 + $0x30] sm:$0xff]
  %v414 = vld [vmem:[%s2 + $0x38] sm:$0xff]
  %v415 = vld [vmem:[%s2 + $0x40] sm:$0xff]
  %v416 = vld [vmem:[%s2 + $0x48] sm:$0xff]
  %v417 = vld [vmem:[%s2 + $0x50] sm:$0xff]
  %v418 = vld [vmem:[%s2 + $0x58] sm:$0xff]
  %v419 = vld [vmem:[%s2 + $0x60] sm:$0xff]
  %v420 = vld [vmem:[%s2 + $0x68] sm:$0xff]
  %v421 = vld [vmem:[%s2 + $0x70] sm:$0xff]
  %v422 = vld [vmem:[%s2 + $0x78] sm:$0xff]
  %v423 = vld [vmem:[%s2 + $0x80] sm:$0xff]
  %v424 = vld [vmem:[%s2 + $0x88] sm:$0xff]
  %v425 = vld [vmem:[%s2 + $0x90] sm:$0xff]
  %v426 = vld [vmem:[%s2 + $0x98] sm:$0xff]
  %v427 = vld [vmem:[%s2 + $0xa0] sm:$0xff]
  %v428 = vld [vmem:[%s2 + $0xa8] sm:$0xff]
  %v429 = vld [vmem:[%s2 + $0xb0] sm:$0xff]
  %v430 = vld [vmem:[%s2 + $0xb8] sm:$0xff]
  %v432 = vsel %vm398, %v358, 0
  %v435 = vsel %vm398, %v359, 0
  %v438 = vsel %vm398, %v360, 0
  %v441 = vsel %vm398, %v361, 0
  %v444 = vsel %vm398, %v362, 0
  %v447 = vsel %vm398, %v363, 0
  %v450 = vsel %vm398, %v364, 0
  %v453 = vsel %vm398, %v365, 0
  %455 = vmatprep.subr.mxu0 0.0
  %456 = vmatpush1.msra.mxu0 %v407
  %457 = vmatprep.subr.mxu0 0.0
  %458 = vmatpush1.msra.mxu0 %v408
  %459 = vmatprep.subr.mxu0 0.0
  %460 = vmatpush1.msra.mxu0 %v409
  %461 = vmatprep.subr.mxu0 0.0
  %462 = vmatpush1.msra.mxu0 %v410
  %463 = vmatprep.subr.mxu0 0.0
  %464 = vmatpush1.msra.mxu0 %v411
  %465 = vmatprep.subr.mxu0 0.0
  %466 = vmatpush1.msra.mxu0 %v412
  %467 = vmatprep.subr.mxu0 0.0
  %468 = vmatpush1.msra.mxu0 %v413
  %469 = vmatprep.subr.mxu0 0.0
  %470 = vmatpush1.msra.mxu0 %v414
  %471 = vmatprep.subr.mxu0 0.0
  %472 = vmatpush1.msra.mxu0 %v415
  %473 = vmatprep.subr.mxu0 0.0
  %474 = vmatpush1.msra.mxu0 %v416
  %475 = vmatprep.subr.mxu0 0.0
  %476 = vmatpush1.msra.mxu0 %v417
  %477 = vmatprep.subr.mxu0 0.0
  %478 = vmatpush1.msra.mxu0 %v418
  %479 = vmatprep.subr.mxu0 0.0
  %480 = vmatpush1.msra.mxu0 %v419
  %481 = vmatprep.subr.mxu0 0.0
  %482 = vmatpush1.msra.mxu0 %v420
  %483 = vmatprep.subr.mxu0 0.0
  %484 = vmatpush1.msra.mxu0 %v421
  %485 = vmatprep.subr.mxu0 0.0
  %486 = vmatpush1.msra.mxu0 %v422
  %487 = vmatprep.subr.mxu0 0.0
  %488 = vmatpush1.msra.mxu0 %v423
  %489 = vmatprep.subr.mxu0 0.0
  %490 = vmatpush1.msra.mxu0 %v424
  %491 = vmatprep.subr.mxu0 0.0
  %492 = vmatpush1.msra.mxu0 %v425
  %493 = vmatprep.subr.mxu0 0.0
  %494 = vmatpush1.msra.mxu0 %v426
  %495 = vmatprep.subr.mxu0 0.0
  %496 = vmatpush1.msra.mxu0 %v427
  %497 = vmatprep.subr.mxu0 0.0
  %498 = vmatpush1.msra.mxu0 %v428
  %499 = vmatprep.subr.mxu0 0.0
  %500 = vmatpush1.msra.mxu0 %v429
  %501 = vmatprep.subr.mxu0 0.0
  %502 = vmatpush1.msra.mxu0 %v430
  %503 = vmatprep.subr.mxu0 0.0
  %504 = vmatpush1.msra.mxu0 0.0
  %505 = vmatprep.subr.mxu0 0.0
  %506 = vmatpush1.msra.mxu0 0.0
  %507 = vmatprep.subr.mxu0 0.0
  %508 = vmatpush1.msra.mxu0 0.0
  %509 = vmatprep.subr.mxu0 0.0
  %510 = vmatpush1.msra.mxu0 0.0
  %511 = vmatprep.subr.mxu0 0.0
  %512 = vmatpush1.msra.mxu0 0.0
  %513 = vmatprep.subr.mxu0 0.0
  %514 = vmatpush1.msra.mxu0 0.0
  %515 = vmatprep.subr.mxu0 0.0
  %516 = vmatpush1.msra.mxu0 0.0
  %517 = vmatprep.subr.mxu0 0.0
  %518 = vmatpush1.msra.mxu0 0.0
  %519 = vmatprep.mubr.f32.mxu0 %v432
  %520 = vmatmul.mubr.f32.gmra.mrb[0].mxu0 %v399
  %v521 = vpop.f32.mrb[0].mxu0
  %v522 = vadd.f32 0.0, %v521
  %v523 = vpop.f32.mrb[0].mxu0
  %524 = vmatprep.mubr.f32.mxu0 %v435
  %525 = vmatmul.mubr.f32.gmra.mrb[0].mxu0 %v400
  %v526 = vpop.f32.mrb[0].mxu0
  %v527 = vadd.f32 0.0, %v526
  %v528 = vpop.f32.mrb[0].mxu0
  %529 = vmatprep.mubr.f32.mxu0 %v438
  %530 = vmatmul.mubr.f32.gmra.mrb[0].mxu0 %v401
  %v531 = vpop.f32.mrb[0].mxu0
  %v532 = vadd.f32 0.0, %v531
  %v533 = vpop.f32.mrb[0].mxu0
  %534 = vmatprep.mubr.f32.mxu0 %v441
  %535 = vmatmul.mubr.f32.gmra.mrb[0].mxu0 %v402
  %v536 = vpop.f32.mrb[0].mxu0
  %v537 = vadd.f32 0.0, %v536
  %v538 = vpop.f32.mrb[0].mxu0
  %539 = vmatprep.mubr.f32.mxu0 %v444
  %540 = vmatmul.mubr.f32.gmra.mrb[0].mxu0 %v403
  %v541 = vpop.f32.mrb[0].mxu0
  %v542 = vadd.f32 0.0, %v541
  %v543 = vpop.f32.mrb[0].mxu0
  %544 = vmatprep.mubr.f32.mxu0 %v447
  %545 = vmatmul.mubr.f32.gmra.mrb[0].mxu0 %v404
  %v546 = vpop.f32.mrb[0].mxu0
  %v547 = vadd.f32 0.0, %v546
  %v548 = vpop.f32.mrb[0].mxu0
  %549 = vmatprep.mubr.f32.mxu0 %v450
  %550 = vmatmul.mubr.f32.gmra.mrb[0].mxu0 %v405
  %v551 = vpop.f32.mrb[0].mxu0
  %v552 = vadd.f32 0.0, %v551
  %v553 = vpop.f32.mrb[0].mxu0
  %554 = vmatprep.mubr.f32.mxu0 %v453
  %555 = vmatmul.mubr.f32.gmra.mrb[0].mxu0 %v406
  %v556 = vpop.f32.mrb[0].mxu0
  %v557 = vadd.f32 0.0, %v556
  %v558 = vpop.f32.mrb[0].mxu0
  %559 = vdwg.mxu0
  %v560 = vadd.f32 %v522, %v527
  %v561 = vadd.f32 %v560, %v532
  %v562 = vadd.f32 %v561, %v537
  %v563 = vadd.f32 %v562, %v542
  %v564 = vadd.f32 %v563, %v547
  %v565 = vadd.f32 %v564, %v552
  %v566 = vadd.f32 %v565, %v557
  %v567 = vrot.slane %v566, 4
  %v568 = vadd.f32 %v566, %v567
  %v569 = vrot.slane %v568, 2
  %v570 = vadd.f32 %v568, %v569
  %v571 = vrot.slane %v570, 1
  %v572 = vadd.f32 %v570, %v571
  %v573 = vmul.f32 %v522, %v522
  %v574 = vmul.f32 %v527, %v527
  %v575 = vmul.f32 %v532, %v532
  %v576 = vmul.f32 %v537, %v537
  %v577 = vmul.f32 %v542, %v542
  %v578 = vmul.f32 %v547, %v547
  %v579 = vmul.f32 %v552, %v552
  %v580 = vmul.f32 %v557, %v557
  %v581 = vadd.f32 %v573, %v574
  %v582 = vadd.f32 %v581, %v575
  %v583 = vadd.f32 %v582, %v576
  %v584 = vadd.f32 %v583, %v577
  %v585 = vadd.f32 %v584, %v578
  %v586 = vadd.f32 %v585, %v579
  %v587 = vadd.f32 %v586, %v580
  %v588 = vrot.slane %v587, 4
  %v589 = vadd.f32 %v587, %v588
  %v590 = vrot.slane %v589, 2
  %v591 = vadd.f32 %v589, %v590
  %v592 = vrot.slane %v591, 1
  %v593 = vadd.f32 %v591, %v592
  %v594 = vadd.s32 %v163, 64
  %v595 = vadd.s32 %v163, 72
  %v596 = vadd.s32 %v163, 80
  %v597 = vadd.s32 %v163, 88
  %v598 = vadd.s32 %v163, 96
  %v599 = vadd.s32 %v163, 104
  %v600 = vadd.s32 %v163, 112
  %v601 = vadd.s32 %v163, 120
  %v602 = vlaneseq
  %v603 = vand.u32 %v602, 127
  %vm604 = vcmp.lt.s32.totalorder %v163, 0
  %v605 = vsub.s32 0, %v163
  %v606 = vsel %vm604, %v605, %v163
  %v607 = vshrl.u32 %v606, 2
  %v608 = vand.u32 %v606, 3
  %v609 = vsub.s32 0, %v608
  %v610 = vsel %vm604, %v609, %v608
  %vm611 = vcmp.lt.s32.totalorder %v164, 0
  %v612 = vsub.s32 0, %v164
  %v613 = vsel %vm611, %v612, %v164
  %v614 = vshrl.u32 %v613, 2
  %v615 = vand.u32 %v613, 3
  %v616 = vsub.s32 0, %v615
  %v617 = vsel %vm611, %v616, %v615
  %vm618 = vcmp.lt.s32.totalorder %v165, 0
  %v619 = vsub.s32 0, %v165
  %v620 = vsel %vm618, %v619, %v165
  %v621 = vshrl.u32 %v620, 2
  %v622 = vand.u32 %v620, 3
  %v623 = vsub.s32 0, %v622
  %v624 = vsel %vm618, %v623, %v622
  %vm625 = vcmp.lt.s32.totalorder %v166, 0
  %v626 = vsub.s32 0, %v166
  %v627 = vsel %vm625, %v626, %v166
  %v628 = vshrl.u32 %v627, 2
  %v629 = vand.u32 %v627, 3
  %v630 = vsub.s32 0, %v629
  %v631 = vsel %vm625, %v630, %v629
  %vm632 = vcmp.lt.s32.totalorder %v167, 0
  %v633 = vsub.s32 0, %v167
  %v634 = vsel %vm632, %v633, %v167
  %v635 = vshrl.u32 %v634, 2
  %v636 = vand.u32 %v634, 3
  %v637 = vsub.s32 0, %v636
  %v638 = vsel %vm632, %v637, %v636
  %vm639 = vcmp.lt.s32.totalorder %v168, 0
  %v640 = vsub.s32 0, %v168
  %v641 = vsel %vm639, %v640, %v168
  %v642 = vshrl.u32 %v641, 2
  %v643 = vand.u32 %v641, 3
  %v644 = vsub.s32 0, %v643
  %v645 = vsel %vm639, %v644, %v643
  %vm646 = vcmp.lt.s32.totalorder %v169, 0
  %v647 = vsub.s32 0, %v169
  %v648 = vsel %vm646, %v647, %v169
  %v649 = vshrl.u32 %v648, 2
  %v650 = vand.u32 %v648, 3
  %v651 = vsub.s32 0, %v650
  %v652 = vsel %vm646, %v651, %v650
  %vm653 = vcmp.lt.s32.totalorder %v170, 0
  %v654 = vsub.s32 0, %v170
  %v655 = vsel %vm653, %v654, %v170
  %v656 = vshrl.u32 %v655, 2
  %v657 = vand.u32 %v655, 3
  %v658 = vsub.s32 0, %v657
  %v659 = vsel %vm653, %v658, %v657
  %vm660 = vcmp.lt.s32.totalorder %v594, 0
  %v661 = vsub.s32 0, %v594
  %v662 = vsel %vm660, %v661, %v594
  %v663 = vshrl.u32 %v662, 2
  %v664 = vand.u32 %v662, 3
  %v665 = vsub.s32 0, %v664
  %v666 = vsel %vm660, %v665, %v664
  %vm667 = vcmp.lt.s32.totalorder %v595, 0
  %v668 = vsub.s32 0, %v595
  %v669 = vsel %vm667, %v668, %v595
  %v670 = vshrl.u32 %v669, 2
  %v671 = vand.u32 %v669, 3
  %v672 = vsub.s32 0, %v671
  %v673 = vsel %vm667, %v672, %v671
  %vm674 = vcmp.lt.s32.totalorder %v596, 0
  %v675 = vsub.s32 0, %v596
  %v676 = vsel %vm674, %v675, %v596
  %v677 = vshrl.u32 %v676, 2
  %v678 = vand.u32 %v676, 3
  %v679 = vsub.s32 0, %v678
  %v680 = vsel %vm674, %v679, %v678
  %vm681 = vcmp.lt.s32.totalorder %v597, 0
  %v682 = vsub.s32 0, %v597
  %v683 = vsel %vm681, %v682, %v597
  %v684 = vshrl.u32 %v683, 2
  %v685 = vand.u32 %v683, 3
  %v686 = vsub.s32 0, %v685
  %v687 = vsel %vm681, %v686, %v685
  %vm688 = vcmp.lt.s32.totalorder %v598, 0
  %v689 = vsub.s32 0, %v598
  %v690 = vsel %vm688, %v689, %v598
  %v691 = vshrl.u32 %v690, 2
  %v692 = vand.u32 %v690, 3
  %v693 = vsub.s32 0, %v692
  %v694 = vsel %vm688, %v693, %v692
  %vm695 = vcmp.lt.s32.totalorder %v599, 0
  %v696 = vsub.s32 0, %v599
  %v697 = vsel %vm695, %v696, %v599
  %v698 = vshrl.u32 %v697, 2
  %v699 = vand.u32 %v697, 3
  %v700 = vsub.s32 0, %v699
  %v701 = vsel %vm695, %v700, %v699
  %vm702 = vcmp.lt.s32.totalorder %v600, 0
  %v703 = vsub.s32 0, %v600
  %v704 = vsel %vm702, %v703, %v600
  %v705 = vshrl.u32 %v704, 2
  %v706 = vand.u32 %v704, 3
  %v707 = vsub.s32 0, %v706
  %v708 = vsel %vm702, %v707, %v706
  %vm709 = vcmp.lt.s32.totalorder %v601, 0
  %v710 = vsub.s32 0, %v601
  %v711 = vsel %vm709, %v710, %v601
  %v712 = vshrl.u32 %v711, 2
  %v713 = vand.u32 %v711, 3
  %v714 = vsub.s32 0, %v713
  %v715 = vsel %vm709, %v714, %v713
  %vm716 = vcmp.ne.s32.totalorder %v610, 0
  %vm717 = vcmp.ne.s32.totalorder %v617, 0
  %vm718 = vcmp.ne.s32.totalorder %v624, 0
  %vm719 = vcmp.ne.s32.totalorder %v631, 0
  %vm720 = vcmp.ne.s32.totalorder %v638, 0
  %vm721 = vcmp.ne.s32.totalorder %v645, 0
  %vm722 = vcmp.ne.s32.totalorder %v652, 0
  %vm723 = vcmp.ne.s32.totalorder %v659, 0
  %vm724 = vcmp.ne.s32.totalorder %v666, 0
  %vm725 = vcmp.ne.s32.totalorder %v673, 0
  %vm726 = vcmp.ne.s32.totalorder %v680, 0
  %vm727 = vcmp.ne.s32.totalorder %v687, 0
  %vm728 = vcmp.ne.s32.totalorder %v694, 0
  %vm729 = vcmp.ne.s32.totalorder %v701, 0
  %vm730 = vcmp.ne.s32.totalorder %v708, 0
  %vm731 = vcmp.ne.s32.totalorder %v715, 0
  %vm732 = vcmp.lt.s32.totalorder %v610, 0
  %vm733 = vcmp.lt.s32.totalorder %v617, 0
  %vm734 = vcmp.lt.s32.totalorder %v624, 0
  %vm735 = vcmp.lt.s32.totalorder %v631, 0
  %vm736 = vcmp.lt.s32.totalorder %v638, 0
  %vm737 = vcmp.lt.s32.totalorder %v645, 0
  %vm738 = vcmp.lt.s32.totalorder %v652, 0
  %vm739 = vcmp.lt.s32.totalorder %v659, 0
  %vm740 = vcmp.lt.s32.totalorder %v666, 0
  %vm741 = vcmp.lt.s32.totalorder %v673, 0
  %vm742 = vcmp.lt.s32.totalorder %v680, 0
  %vm743 = vcmp.lt.s32.totalorder %v687, 0
  %vm744 = vcmp.lt.s32.totalorder %v694, 0
  %vm745 = vcmp.lt.s32.totalorder %v701, 0
  %vm746 = vcmp.lt.s32.totalorder %v708, 0
  %vm747 = vcmp.lt.s32.totalorder %v715, 0
  %vm748 = vmand %vm732, %vm716
  %vm749 = vmand %vm733, %vm717
  %vm750 = vmand %vm734, %vm718
  %vm751 = vmand %vm735, %vm719
  %vm752 = vmand %vm736, %vm720
  %vm753 = vmand %vm737, %vm721
  %vm754 = vmand %vm738, %vm722
  %vm755 = vmand %vm739, %vm723
  %vm756 = vmand %vm740, %vm724
  %vm757 = vmand %vm741, %vm725
  %vm758 = vmand %vm742, %vm726
  %vm759 = vmand %vm743, %vm727
  %vm760 = vmand %vm744, %vm728
  %vm761 = vmand %vm745, %vm729
  %vm762 = vmand %vm746, %vm730
  %vm763 = vmand %vm747, %vm731
  %v764 = vadd.s32 %v610, 4
  %v765 = vadd.s32 %v617, 4
  %v766 = vadd.s32 %v624, 4
  %v767 = vadd.s32 %v631, 4
  %v768 = vadd.s32 %v638, 4
  %v769 = vadd.s32 %v645, 4
  %v770 = vadd.s32 %v652, 4
  %v771 = vadd.s32 %v659, 4
  %v772 = vadd.s32 %v666, 4
  %v773 = vadd.s32 %v673, 4
  %v774 = vadd.s32 %v680, 4
  %v775 = vadd.s32 %v687, 4
  %v776 = vadd.s32 %v694, 4
  %v777 = vadd.s32 %v701, 4
  %v778 = vadd.s32 %v708, 4
  %v779 = vadd.s32 %v715, 4
  %v780 = vsel %vm748, %v764, %v610
  %v781 = vsel %vm749, %v765, %v617
  %v782 = vsel %vm750, %v766, %v624
  %v783 = vsel %vm751, %v767, %v631
  %v784 = vsel %vm752, %v768, %v638
  %v785 = vsel %vm753, %v769, %v645
  %v786 = vsel %vm754, %v770, %v652
  %v787 = vsel %vm755, %v771, %v659
  %v788 = vsel %vm756, %v772, %v666
  %v789 = vsel %vm757, %v773, %v673
  %v790 = vsel %vm758, %v774, %v680
  %v791 = vsel %vm759, %v775, %v687
  %v792 = vsel %vm760, %v776, %v694
  %v793 = vsel %vm761, %v777, %v701
  %v794 = vsel %vm762, %v778, %v708
  %v795 = vsel %vm763, %v779, %v715
  %vm796 = vcmp.eq.s32.totalorder %v780, %v603
  %vm797 = vcmp.eq.s32.totalorder %v781, %v603
  %vm798 = vcmp.eq.s32.totalorder %v782, %v603
  %vm799 = vcmp.eq.s32.totalorder %v783, %v603
  %vm800 = vcmp.eq.s32.totalorder %v784, %v603
  %vm801 = vcmp.eq.s32.totalorder %v785, %v603
  %vm802 = vcmp.eq.s32.totalorder %v786, %v603
  %vm803 = vcmp.eq.s32.totalorder %v787, %v603
  %vm804 = vcmp.eq.s32.totalorder %v788, %v603
  %vm805 = vcmp.eq.s32.totalorder %v789, %v603
  %vm806 = vcmp.eq.s32.totalorder %v790, %v603
  %vm807 = vcmp.eq.s32.totalorder %v791, %v603
  %vm808 = vcmp.eq.s32.totalorder %v792, %v603
  %vm809 = vcmp.eq.s32.totalorder %v793, %v603
  %vm810 = vcmp.eq.s32.totalorder %v794, %v603
  %vm811 = vcmp.eq.s32.totalorder %v795, %v603
  %v812 = vsel %vm796, 1, 0
  %v813 = vsel %vm797, 1, 0
  %v814 = vsel %vm798, 1, 0
  %v815 = vsel %vm799, 1, 0
  %v816 = vsel %vm800, 1, 0
  %v817 = vsel %vm801, 1, 0
  %v818 = vsel %vm802, 1, 0
  %v819 = vsel %vm803, 1, 0
  %v820 = vsel %vm804, 1, 0
  %v821 = vsel %vm805, 1, 0
  %v822 = vsel %vm806, 1, 0
  %v823 = vsel %vm807, 1, 0
  %v824 = vsel %vm808, 1, 0
  %v825 = vsel %vm809, 1, 0
  %v826 = vsel %vm810, 1, 0
  %v827 = vsel %vm811, 1, 0
  %v828 = vcvt.s32.f32 %v812
  %v829 = vcvt.s32.f32 %v813
  %v830 = vcvt.s32.f32 %v814
  %v831 = vcvt.s32.f32 %v815
  %v832 = vcvt.s32.f32 %v816
  %v833 = vcvt.s32.f32 %v817
  %v834 = vcvt.s32.f32 %v818
  %v835 = vcvt.s32.f32 %v819
  %v836 = vcvt.s32.f32 %v820
  %v837 = vcvt.s32.f32 %v821
  %v838 = vcvt.s32.f32 %v822
  %v839 = vcvt.s32.f32 %v823
  %v840 = vcvt.s32.f32 %v824
  %v841 = vcvt.s32.f32 %v825
  %v842 = vcvt.s32.f32 %v826
  %v843 = vcvt.s32.f32 %v827
  %vm844 = vcmask 1040384
  %v845 = vsel %vm844, %v572, %v593
  %846 = vmatprep.subr.mxu0 0.0
  %847 = vmatpush1.msra.mxu0 %v828
  %848 = vmatprep.subr.mxu0 0.0
  %849 = vmatpush1.msra.mxu0 %v829
  %850 = vmatprep.subr.mxu0 0.0
  %851 = vmatpush1.msra.mxu0 %v830
  %852 = vmatprep.subr.mxu0 0.0
  %853 = vmatpush1.msra.mxu0 %v831
  %854 = vmatprep.subr.mxu0 0.0
  %855 = vmatpush1.msra.mxu0 %v832
  %856 = vmatprep.subr.mxu0 0.0
  %857 = vmatpush1.msra.mxu0 %v833
  %858 = vmatprep.subr.mxu0 0.0
  %859 = vmatpush1.msra.mxu0 %v834
  %860 = vmatprep.subr.mxu0 0.0
  %861 = vmatpush1.msra.mxu0 %v835
  %862 = vmatprep.subr.mxu0 0.0
  %863 = vmatpush1.msra.mxu0 %v836
  %864 = vmatprep.subr.mxu0 0.0
  %865 = vmatpush1.msra.mxu0 %v837
  %866 = vmatprep.subr.mxu0 0.0
  %867 = vmatpush1.msra.mxu0 %v838
  %868 = vmatprep.subr.mxu0 0.0
  %869 = vmatpush1.msra.mxu0 %v839
  %870 = vmatprep.subr.mxu0 0.0
  %871 = vmatpush1.msra.mxu0 %v840
  %872 = vmatprep.subr.mxu0 0.0
  %873 = vmatpush1.msra.mxu0 %v841
  %874 = vmatprep.subr.mxu0 0.0
  %875 = vmatpush1.msra.mxu0 %v842
  %876 = vmatprep.subr.mxu0 0.0
  %877 = vmatpush1.msra.mxu0 %v843
  %878 = vmatprep.subr.mxu0 0.0
  %879 = vmatpush1.msra.mxu0 0.0
  %880 = vmatprep.subr.mxu0 0.0
  %881 = vmatpush1.msra.mxu0 0.0
  %882 = vmatprep.subr.mxu0 0.0
  %883 = vmatpush1.msra.mxu0 0.0
  %884 = vmatprep.subr.mxu0 0.0
  %885 = vmatpush1.msra.mxu0 0.0
  %886 = vmatprep.subr.mxu0 0.0
  %887 = vmatpush1.msra.mxu0 0.0
  %888 = vmatprep.subr.mxu0 0.0
  %889 = vmatpush1.msra.mxu0 0.0
  %890 = vmatprep.subr.mxu0 0.0
  %891 = vmatpush1.msra.mxu0 0.0
  %892 = vmatprep.subr.mxu0 0.0
  %893 = vmatpush1.msra.mxu0 0.0
  %894 = vmatprep.subr.mxu0 0.0
  %895 = vmatpush1.msra.mxu0 0.0
  %896 = vmatprep.subr.mxu0 0.0
  %897 = vmatpush1.msra.mxu0 0.0
  %898 = vmatprep.subr.mxu0 0.0
  %899 = vmatpush1.msra.mxu0 0.0
  %900 = vmatprep.subr.mxu0 0.0
  %901 = vmatpush1.msra.mxu0 0.0
  %902 = vmatprep.subr.mxu0 0.0
  %903 = vmatpush1.msra.mxu0 0.0
  %904 = vmatprep.subr.mxu0 0.0
  %905 = vmatpush1.msra.mxu0 0.0
  %906 = vmatprep.subr.mxu0 0.0
  %907 = vmatpush1.msra.mxu0 0.0
  %908 = vmatprep.subr.mxu0 0.0
  %909 = vmatpush1.msra.mxu0 0.0
  %910 = vmatprep.mubr.f32.mxu0 0.0
  %911 = vmatmul.mubr.f32.gmra.mrb[0].mxu0 %v845
  %v912 = vpop.f32.mrb[0].mxu0
  %v913 = vadd.f32 0.0, %v912
  %v914 = vpop.f32.mrb[0].mxu0
  %915 = vdwg.mxu0
  %v916 = vmul.f32 %v913, 0.00048828125
  %v917 = vmul.f32 %v916, %v916
  %v919 = vrot.slane %v917, 7
  %v921 = vsub.f32 %v916, %v919
  %v922 = vadd.f32 %v921, 1e-05
  %v923 = vrsqrt.pop %v922
  %v925 = vrot.slane %v923, 1
  %v927 = vmul.f32 %v315, %v925
  %v928 = vmul.f32 %v916, %v927
  %v930 = vrot.slane %v928, 7
  %v932 = vsub.f32 %v315, %v930
  %vm933 = vcmp.lt.s32.totalorder %v603, 0
  %v934 = vsub.s32 0, %v603
  %v935 = vsel %vm933, %v934, %v603
  %v936 = vshrl.u32 %v935, 2
  %v937 = vand.u32 %v935, 3
  %v938 = vsub.s32 0, %v937
  %v939 = vsel %vm933, %v938, %v937
  %vm940 = vcmp.ne.s32.totalorder %v939, 0
  %vm941 = vcmp.lt.s32.totalorder %v939, 0
  %vm942 = vmand %vm941, %vm940
  %v943 = vadd.s32 %v939, 4
  %v944 = vsel %vm942, %v943, %v939
  %vm945 = vcmp.eq.s32.totalorder %v163, %v944
  %v946 = vsel %vm945, 1, 0
  %v947 = vcvt.s32.f32 %v946
  %v948 = vsel %vm844, %v927, %v932
  %vm949 = vcmask 31744
  %v951 = vsel %vm949, %v948, 0
  %vm953 = vcmask 1043456
  %v955 = vsel %vm953, %v947, 0
  %957 = vmatprep.subr.mxu0 0.0
  %958 = vmatpush1.msra.mxu0 %v955
  %959 = vmatprep.subr.mxu0 0.0
  %960 = vmatpush1.msra.mxu0 0.0
  %961 = vmatprep.subr.mxu0 0.0
  %962 = vmatpush1.msra.mxu0 0.0
  %963 = vmatprep.subr.mxu0 0.0
  %964 = vmatpush1.msra.mxu0 0.0
  %965 = vmatprep.subr.mxu0 0.0
  %966 = vmatpush1.msra.mxu0 0.0
  %967 = vmatprep.subr.mxu0 0.0
  %968 = vmatpush1.msra.mxu0 0.0
  %969 = vmatprep.subr.mxu0 0.0
  %970 = vmatpush1.msra.mxu0 0.0
  %971 = vmatprep.subr.mxu0 0.0
  %972 = vmatpush1.msra.mxu0 0.0
  %973 = vmatprep.subr.mxu0 0.0
  %974 = vmatpush1.msra.mxu0 0.0
  %975 = vmatprep.subr.mxu0 0.0
  %976 = vmatpush1.msra.mxu0 0.0
  %977 = vmatprep.subr.mxu0 0.0
  %978 = vmatpush1.msra.mxu0 0.0
  %979 = vmatprep.subr.mxu0 0.0
  %980 = vmatpush1.msra.mxu0 0.0
  %981 = vmatprep.subr.mxu0 0.0
  %982 = vmatpush1.msra.mxu0 0.0
  %983 = vmatprep.subr.mxu0 0.0
  %984 = vmatpush1.msra.mxu0 0.0
  %985 = vmatprep.subr.mxu0 0.0
  %986 = vmatpush1.msra.mxu0 0.0
  %987 = vmatprep.subr.mxu0 0.0
  %988 = vmatpush1.msra.mxu0 0.0
  %989 = vmatprep.subr.mxu0 0.0
  %990 = vmatpush1.msra.mxu0 0.0
  %991 = vmatprep.subr.mxu0 0.0
  %992 = vmatpush1.msra.mxu0 0.0
  %993 = vmatprep.subr.mxu0 0.0
  %994 = vmatpush1.msra.mxu0 0.0
  %995 = vmatprep.subr.mxu0 0.0
  %996 = vmatpush1.msra.mxu0 0.0
  %997 = vmatprep.subr.mxu0 0.0
  %998 = vmatpush1.msra.mxu0 0.0
  %999 = vmatprep.subr.mxu0 0.0
  %1000 = vmatpush1.msra.mxu0 0.0
  %1001 = vmatprep.subr.mxu0 0.0
  %1002 = vmatpush1.msra.mxu0 0.0
  %1003 = vmatprep.subr.mxu0 0.0
  %1004 = vmatpush1.msra.mxu0 0.0
  %1005 = vmatprep.subr.mxu0 0.0
  %1006 = vmatpush1.msra.mxu0 0.0
  %1007 = vmatprep.subr.mxu0 0.0
  %1008 = vmatpush1.msra.mxu0 0.0
  %1009 = vmatprep.subr.mxu0 0.0
  %1010 = vmatpush1.msra.mxu0 0.0
  %1011 = vmatprep.subr.mxu0 0.0
  %1012 = vmatpush1.msra.mxu0 0.0
  %1013 = vmatprep.subr.mxu0 0.0
  %1014 = vmatpush1.msra.mxu0 0.0
  %1015 = vmatprep.subr.mxu0 0.0
  %1016 = vmatpush1.msra.mxu0 0.0
  %1017 = vmatprep.subr.mxu0 0.0
  %1018 = vmatpush1.msra.mxu0 0.0
  %1019 = vmatprep.subr.mxu0 0.0
  %1020 = vmatpush1.msra.mxu0 0.0
  %1021 = vmatprep.mubr.f32.mxu0 0.0
  %1022 = vmatmul.mubr.f32.gmra.mrb[0].mxu0 %v951
  %v1023 = vpop.f32.mrb[0].mxu0
  %v1024 = vadd.f32 0.0, %v1023
  %v1025 = vpop.f32.mrb[0].mxu0
  %1026 = vdwg.mxu0
  %v1027 = vlaneseq
  %v1028 = vshrl.u32 %v1027, 7
  %v1029 = vsub.s32 0, %v1028
  %v1030 = vrot.slane %v1024, %v1029
  %v1031 = vmul.f32 %v522, %v1030
  %v1032 = vmul.f32 %v527, %v1030
  %v1033 = vmul.f32 %v532, %v1030
  %v1034 = vmul.f32 %v537, %v1030
  %v1035 = vmul.f32 %v542, %v1030
  %v1036 = vmul.f32 %v547, %v1030
  %v1037 = vmul.f32 %v552, %v1030
  %v1038 = vmul.f32 %v557, %v1030
  %v1039 = vlaneseq
  %v1040 = vshrl.u32 %v1039, 7
  %v1041 = vsub.s32 1, %v1040
  %v1042 = vrot.slane %v1024, %v1041
  %v1043 = vadd.f32 %v1031, %v1042
  %v1044 = vadd.f32 %v1032, %v1042
  %v1045 = vadd.f32 %v1033, %v1042
  %v1046 = vadd.f32 %v1034, %v1042
  %v1047 = vadd.f32 %v1035, %v1042
  %v1048 = vadd.f32 %v1036, %v1042
  %v1049 = vadd.f32 %v1037, %v1042
  %v1050 = vadd.f32 %v1038, %v1042
  %v1051 = vmax.f32 %v1043, 0.0
  %v1052 = vmax.f32 %v1044, 0.0
  %v1053 = vmax.f32 %v1045, 0.0
  %v1054 = vmax.f32 %v1046, 0.0
  %v1055 = vmax.f32 %v1047, 0.0
  %v1056 = vmax.f32 %v1048, 0.0
  %v1057 = vmax.f32 %v1049, 0.0
  %v1058 = vmax.f32 %v1050, 0.0
  %v1059 = vrot.slane %v1051, 7
  %v1060 = vrot.slane %v1052, 7
  %v1061 = vrot.slane %v1053, 7
  %v1062 = vrot.slane %v1054, 7
  %v1063 = vrot.slane %v1055, 7
  %v1064 = vrot.slane %v1056, 7
  %v1065 = vrot.slane %v1057, 7
  %v1066 = vrot.slane %v1058, 7
  %v1067 = vsel %vm324, %v1065, %v1066
  %v1068 = vsel %vm324, %v1064, %v1065
  %v1069 = vsel %vm324, %v1063, %v1064
  %v1070 = vsel %vm324, %v1062, %v1063
  %v1071 = vsel %vm324, %v1061, %v1062
  %v1072 = vsel %vm324, %v1060, %v1061
  %v1073 = vsel %vm324, %v1059, %v1060
  %v1074 = vsel %vm324, %v1066, %v1059
  %v1075 = vmul.f32 %v1074, %v283
  %v1076 = vmul.f32 %v1073, %v284
  %v1077 = vmul.f32 %v1072, %v285
  %v1078 = vmul.f32 %v1071, %v286
  %v1079 = vmul.f32 %v1070, %v287
  %v1080 = vmul.f32 %v1069, %v288
  %v1081 = vmul.f32 %v1068, %v289
  %v1082 = vmul.f32 %v1067, %v290
  %v1083 = vrot.slane %v1051, 1
  %v1084 = vrot.slane %v1052, 1
  %v1085 = vrot.slane %v1053, 1
  %v1086 = vrot.slane %v1054, 1
  %v1087 = vrot.slane %v1055, 1
  %v1088 = vrot.slane %v1056, 1
  %v1089 = vrot.slane %v1057, 1
  %v1090 = vrot.slane %v1058, 1
  %v1091 = vsel %vm349, %v1089, %v1090
  %v1092 = vsel %vm349, %v1088, %v1089
  %v1093 = vsel %vm349, %v1087, %v1088
  %v1094 = vsel %vm349, %v1086, %v1087
  %v1095 = vsel %vm349, %v1085, %v1086
  %v1096 = vsel %vm349, %v1084, %v1085
  %v1097 = vsel %vm349, %v1083, %v1084
  %v1098 = vsel %vm349, %v1090, %v1083
  %v1099 = vmul.f32 %v1097, %v307
  %v1100 = vmul.f32 %v1096, %v308
  %v1101 = vmul.f32 %v1095, %v309
  %v1102 = vmul.f32 %v1094, %v310
  %v1103 = vmul.f32 %v1093, %v311
  %v1104 = vmul.f32 %v1092, %v312
  %v1105 = vmul.f32 %v1091, %v313
  %v1106 = vmul.f32 %v1098, %v314
  %v1107 = vld [vmem:[%s3] sm:$0xff]
  %v1108 = vld [vmem:[%s3 + $0x8] sm:$0xff]
  %v1109 = vld [vmem:[%s3 + $0x10] sm:$0xff]
  %v1110 = vld [vmem:[%s3 + $0x18] sm:$0xff]
  %v1111 = vld [vmem:[%s3 + $0x20] sm:$0xff]
  %v1112 = vld [vmem:[%s3 + $0x28] sm:$0xff]
  %v1113 = vld [vmem:[%s3 + $0x30] sm:$0xff]
  %v1114 = vld [vmem:[%s3 + $0x38] sm:$0xff]
  %v1115 = vld [vmem:[%s3 + $0x40] sm:$0xff]
  %v1116 = vld [vmem:[%s3 + $0x48] sm:$0xff]
  %v1117 = vld [vmem:[%s3 + $0x50] sm:$0xff]
  %v1118 = vld [vmem:[%s3 + $0x58] sm:$0xff]
  %v1119 = vld [vmem:[%s3 + $0x60] sm:$0xff]
  %v1120 = vld [vmem:[%s3 + $0x68] sm:$0xff]
  %v1121 = vld [vmem:[%s3 + $0x70] sm:$0xff]
  %v1122 = vld [vmem:[%s3 + $0x78] sm:$0xff]
  %v1123 = vld [vmem:[%s3 + $0x80] sm:$0xff]
  %v1124 = vld [vmem:[%s3 + $0x88] sm:$0xff]
  %v1125 = vld [vmem:[%s3 + $0x90] sm:$0xff]
  %v1126 = vld [vmem:[%s3 + $0x98] sm:$0xff]
  %v1127 = vld [vmem:[%s3 + $0xa0] sm:$0xff]
  %v1128 = vld [vmem:[%s3 + $0xa8] sm:$0xff]
  %v1129 = vld [vmem:[%s3 + $0xb0] sm:$0xff]
  %v1130 = vld [vmem:[%s3 + $0xb8] sm:$0xff]
  %v1131 = vld [vmem:[%s3 + $0xc0] sm:$0xff]
  %v1132 = vld [vmem:[%s3 + $0xc8] sm:$0xff]
  %v1133 = vld [vmem:[%s3 + $0xd0] sm:$0xff]
  %v1134 = vld [vmem:[%s3 + $0xd8] sm:$0xff]
  %v1135 = vld [vmem:[%s3 + $0xe0] sm:$0xff]
  %v1136 = vld [vmem:[%s3 + $0xe8] sm:$0xff]
  %v1137 = vld [vmem:[%s3 + $0xf0] sm:$0xff]
  %v1138 = vld [vmem:[%s3 + $0xf8] sm:$0xff]
  %v1139 = vld [vmem:[%s3 + $0x100] sm:$0xff]
  %v1140 = vld [vmem:[%s3 + $0x108] sm:$0xff]
  %v1141 = vld [vmem:[%s3 + $0x110] sm:$0xff]
  %v1142 = vld [vmem:[%s3 + $0x118] sm:$0xff]
  %v1143 = vld [vmem:[%s3 + $0x120] sm:$0xff]
  %v1144 = vld [vmem:[%s3 + $0x128] sm:$0xff]
  %v1145 = vld [vmem:[%s3 + $0x130] sm:$0xff]
  %v1146 = vld [vmem:[%s3 + $0x138] sm:$0xff]
  %v1147 = vld [vmem:[%s3 + $0x140] sm:$0xff]
  %v1148 = vld [vmem:[%s3 + $0x148] sm:$0xff]
  %v1149 = vld [vmem:[%s3 + $0x150] sm:$0xff]
  %v1150 = vld [vmem:[%s3 + $0x158] sm:$0xff]
  %v1151 = vld [vmem:[%s3 + $0x160] sm:$0xff]
  %v1152 = vld [vmem:[%s3 + $0x168] sm:$0xff]
  %v1153 = vld [vmem:[%s3 + $0x170] sm:$0xff]
  %v1154 = vld [vmem:[%s3 + $0x178] sm:$0xff]
  %v1155 = vld [vmem:[%s3 + $0x180] sm:$0xff]
  %v1156 = vld [vmem:[%s3 + $0x188] sm:$0xff]
  %v1157 = vld [vmem:[%s3 + $0x190] sm:$0xff]
  %v1158 = vld [vmem:[%s3 + $0x198] sm:$0xff]
  %v1159 = vld [vmem:[%s3 + $0x1a0] sm:$0xff]
  %v1160 = vld [vmem:[%s3 + $0x1a8] sm:$0xff]
  %v1161 = vld [vmem:[%s3 + $0x1b0] sm:$0xff]
  %v1162 = vld [vmem:[%s3 + $0x1b8] sm:$0xff]
  %v1163 = vld [vmem:[%s3 + $0x1c0] sm:$0xff]
  %v1164 = vld [vmem:[%s3 + $0x1c8] sm:$0xff]
  %v1165 = vld [vmem:[%s3 + $0x1d0] sm:$0xff]
  %v1166 = vld [vmem:[%s3 + $0x1d8] sm:$0xff]
  %v1167 = vld [vmem:[%s3 + $0x1e0] sm:$0xff]
  %v1168 = vld [vmem:[%s3 + $0x1e8] sm:$0xff]
  %v1169 = vld [vmem:[%s3 + $0x1f0] sm:$0xff]
  %v1170 = vld [vmem:[%s3 + $0x1f8] sm:$0xff]
  %v1171 = vld [vmem:[%s3 + $0x200] sm:$0xff]
  %v1172 = vld [vmem:[%s3 + $0x208] sm:$0xff]
  %v1173 = vld [vmem:[%s3 + $0x210] sm:$0xff]
  %v1174 = vld [vmem:[%s3 + $0x218] sm:$0xff]
  %v1175 = vld [vmem:[%s3 + $0x220] sm:$0xff]
  %v1176 = vld [vmem:[%s3 + $0x228] sm:$0xff]
  %v1177 = vld [vmem:[%s3 + $0x230] sm:$0xff]
  %v1178 = vld [vmem:[%s3 + $0x238] sm:$0xff]
  %v1179 = vld [vmem:[%s3 + $0x240] sm:$0xff]
  %v1180 = vld [vmem:[%s3 + $0x248] sm:$0xff]
  %v1181 = vld [vmem:[%s3 + $0x250] sm:$0xff]
  %v1182 = vld [vmem:[%s3 + $0x258] sm:$0xff]
  %v1183 = vld [vmem:[%s3 + $0x260] sm:$0xff]
  %v1184 = vld [vmem:[%s3 + $0x268] sm:$0xff]
  %v1185 = vld [vmem:[%s3 + $0x270] sm:$0xff]
  %v1186 = vld [vmem:[%s3 + $0x278] sm:$0xff]
  %v1187 = vld [vmem:[%s3 + $0x280] sm:$0xff]
  %v1188 = vld [vmem:[%s3 + $0x288] sm:$0xff]
  %v1189 = vld [vmem:[%s3 + $0x290] sm:$0xff]
  %v1190 = vld [vmem:[%s3 + $0x298] sm:$0xff]
  %v1191 = vld [vmem:[%s3 + $0x2a0] sm:$0xff]
  %v1192 = vld [vmem:[%s3 + $0x2a8] sm:$0xff]
  %v1193 = vld [vmem:[%s3 + $0x2b0] sm:$0xff]
  %v1194 = vld [vmem:[%s3 + $0x2b8] sm:$0xff]
  %v1195 = vld [vmem:[%s3 + $0x2c0] sm:$0xff]
  %v1196 = vld [vmem:[%s3 + $0x2c8] sm:$0xff]
  %v1197 = vld [vmem:[%s3 + $0x2d0] sm:$0xff]
  %v1198 = vld [vmem:[%s3 + $0x2d8] sm:$0xff]
  %v1199 = vld [vmem:[%s3 + $0x2e0] sm:$0xff]
  %v1200 = vld [vmem:[%s3 + $0x2e8] sm:$0xff]
  %v1201 = vld [vmem:[%s3 + $0x2f0] sm:$0xff]
  %v1202 = vld [vmem:[%s3 + $0x2f8] sm:$0xff]
  %1203 = vmatprep.subr.mxu0 %v1108
  %1204 = vmatpush1.msra.mxu0 %v1107
  %1205 = vmatprep.subr.mxu0 %v1110
  %1206 = vmatpush1.msra.mxu0 %v1109
  %1207 = vmatprep.subr.mxu0 %v1112
  %1208 = vmatpush1.msra.mxu0 %v1111
  %1209 = vmatprep.subr.mxu0 %v1114
  %1210 = vmatpush1.msra.mxu0 %v1113
  %1211 = vmatprep.subr.mxu0 %v1116
  %1212 = vmatpush1.msra.mxu0 %v1115
  %1213 = vmatprep.subr.mxu0 %v1118
  %1214 = vmatpush1.msra.mxu0 %v1117
  %1215 = vmatprep.subr.mxu0 %v1120
  %1216 = vmatpush1.msra.mxu0 %v1119
  %1217 = vmatprep.subr.mxu0 %v1122
  %1218 = vmatpush1.msra.mxu0 %v1121
  %1219 = vmatprep.subr.mxu0 %v1124
  %1220 = vmatpush1.msra.mxu0 %v1123
  %1221 = vmatprep.subr.mxu0 %v1126
  %1222 = vmatpush1.msra.mxu0 %v1125
  %1223 = vmatprep.subr.mxu0 %v1128
  %1224 = vmatpush1.msra.mxu0 %v1127
  %1225 = vmatprep.subr.mxu0 %v1130
  %1226 = vmatpush1.msra.mxu0 %v1129
  %1227 = vmatprep.subr.mxu0 %v1132
  %1228 = vmatpush1.msra.mxu0 %v1131
  %1229 = vmatprep.subr.mxu0 %v1134
  %1230 = vmatpush1.msra.mxu0 %v1133
  %1231 = vmatprep.subr.mxu0 %v1136
  %1232 = vmatpush1.msra.mxu0 %v1135
  %1233 = vmatprep.subr.mxu0 %v1138
  %1234 = vmatpush1.msra.mxu0 %v1137
  %1235 = vmatprep.subr.mxu0 %v1140
  %1236 = vmatpush1.msra.mxu0 %v1139
  %1237 = vmatprep.subr.mxu0 %v1142
  %1238 = vmatpush1.msra.mxu0 %v1141
  %1239 = vmatprep.subr.mxu0 %v1144
  %1240 = vmatpush1.msra.mxu0 %v1143
  %1241 = vmatprep.subr.mxu0 %v1146
  %1242 = vmatpush1.msra.mxu0 %v1145
  %1243 = vmatprep.subr.mxu0 %v1148
  %1244 = vmatpush1.msra.mxu0 %v1147
  %1245 = vmatprep.subr.mxu0 %v1150
  %1246 = vmatpush1.msra.mxu0 %v1149
  %1247 = vmatprep.subr.mxu0 %v1152
  %1248 = vmatpush1.msra.mxu0 %v1151
  %1249 = vmatprep.subr.mxu0 %v1154
  %1250 = vmatpush1.msra.mxu0 %v1153
  %1251 = vmatprep.subr.mxu0 %v1156
  %1252 = vmatpush1.msra.mxu0 %v1155
  %1253 = vmatprep.subr.mxu0 %v1158
  %1254 = vmatpush1.msra.mxu0 %v1157
  %1255 = vmatprep.subr.mxu0 %v1160
  %1256 = vmatpush1.msra.mxu0 %v1159
  %1257 = vmatprep.subr.mxu0 %v1162
  %1258 = vmatpush1.msra.mxu0 %v1161
  %1259 = vmatprep.subr.mxu0 %v1164
  %1260 = vmatpush1.msra.mxu0 %v1163
  %1261 = vmatprep.subr.mxu0 %v1166
  %1262 = vmatpush1.msra.mxu0 %v1165
  %1263 = vmatprep.subr.mxu0 %v1168
  %1264 = vmatpush1.msra.mxu0 %v1167
  %1265 = vmatprep.subr.mxu0 %v1170
  %1266 = vmatpush1.msra.mxu0 %v1169
  %1267 = vmatprep.mubr.f32.mxu0 %v1051
  %1268 = vmatmul.mubr.f32.gmra.mrb[0].mxu0 %v1075
  %v1269 = vpop.f32.mrb[0].mxu0
  %v1270 = vadd.f32 0.0, %v1269
  %v1271 = vpop.f32.mrb[0].mxu0
  %v1272 = vadd.f32 0.0, %v1271
  %1273 = vmatprep.mubr.f32.mxu0 %v1052
  %1274 = vmatmul.mubr.f32.gmra.mrb[0].mxu0 %v1076
  %v1275 = vpop.f32.mrb[0].mxu0
  %v1276 = vadd.f32 0.0, %v1275
  %v1277 = vpop.f32.mrb[0].mxu0
  %v1278 = vadd.f32 0.0, %v1277
  %1279 = vmatprep.mubr.f32.mxu0 %v1053
  %1280 = vmatmul.mubr.f32.gmra.mrb[0].mxu0 %v1077
  %v1281 = vpop.f32.mrb[0].mxu0
  %v1282 = vadd.f32 0.0, %v1281
  %v1283 = vpop.f32.mrb[0].mxu0
  %v1284 = vadd.f32 0.0, %v1283
  %1285 = vmatprep.mubr.f32.mxu0 %v1054
  %1286 = vmatmul.mubr.f32.gmra.mrb[0].mxu0 %v1078
  %v1287 = vpop.f32.mrb[0].mxu0
  %v1288 = vadd.f32 0.0, %v1287
  %v1289 = vpop.f32.mrb[0].mxu0
  %v1290 = vadd.f32 0.0, %v1289
  %1291 = vmatprep.mubr.f32.mxu0 %v1055
  %1292 = vmatmul.mubr.f32.gmra.mrb[0].mxu0 %v1079
  %v1293 = vpop.f32.mrb[0].mxu0
  %v1294 = vadd.f32 0.0, %v1293
  %v1295 = vpop.f32.mrb[0].mxu0
  %v1296 = vadd.f32 0.0, %v1295
  %1297 = vmatprep.mubr.f32.mxu0 %v1056
  %1298 = vmatmul.mubr.f32.gmra.mrb[0].mxu0 %v1080
  %v1299 = vpop.f32.mrb[0].mxu0
  %v1300 = vadd.f32 0.0, %v1299
  %v1301 = vpop.f32.mrb[0].mxu0
  %v1302 = vadd.f32 0.0, %v1301
  %1303 = vmatprep.mubr.f32.mxu0 %v1057
  %1304 = vmatmul.mubr.f32.gmra.mrb[0].mxu0 %v1081
  %v1305 = vpop.f32.mrb[0].mxu0
  %v1306 = vadd.f32 0.0, %v1305
  %v1307 = vpop.f32.mrb[0].mxu0
  %v1308 = vadd.f32 0.0, %v1307
  %1309 = vmatprep.mubr.f32.mxu0 %v1058
  %1310 = vmatmul.mubr.f32.gmra.mrb[0].mxu0 %v1082
  %v1311 = vpop.f32.mrb[0].mxu0
  %v1312 = vadd.f32 0.0, %v1311
  %v1313 = vpop.f32.mrb[0].mxu0
  %v1314 = vadd.f32 0.0, %v1313
  %1315 = vdwg.mxu0
  %1316 = vmatprep.subr.mxu0 %v1172
  %1317 = vmatpush1.msra.mxu0 %v1171
  %1318 = vmatprep.subr.mxu0 %v1174
  %1319 = vmatpush1.msra.mxu0 %v1173
  %1320 = vmatprep.subr.mxu0 %v1176
  %1321 = vmatpush1.msra.mxu0 %v1175
  %1322 = vmatprep.subr.mxu0 %v1178
  %1323 = vmatpush1.msra.mxu0 %v1177
  %1324 = vmatprep.subr.mxu0 %v1180
  %1325 = vmatpush1.msra.mxu0 %v1179
  %1326 = vmatprep.subr.mxu0 %v1182
  %1327 = vmatpush1.msra.mxu0 %v1181
  %1328 = vmatprep.subr.mxu0 %v1184
  %1329 = vmatpush1.msra.mxu0 %v1183
  %1330 = vmatprep.subr.mxu0 %v1186
  %1331 = vmatpush1.msra.mxu0 %v1185
  %1332 = vmatprep.subr.mxu0 %v1188
  %1333 = vmatpush1.msra.mxu0 %v1187
  %1334 = vmatprep.subr.mxu0 %v1190
  %1335 = vmatpush1.msra.mxu0 %v1189
  %1336 = vmatprep.subr.mxu0 %v1192
  %1337 = vmatpush1.msra.mxu0 %v1191
  %1338 = vmatprep.subr.mxu0 %v1194
  %1339 = vmatpush1.msra.mxu0 %v1193
  %1340 = vmatprep.subr.mxu0 %v1196
  %1341 = vmatpush1.msra.mxu0 %v1195
  %1342 = vmatprep.subr.mxu0 %v1198
  %1343 = vmatpush1.msra.mxu0 %v1197
  %1344 = vmatprep.subr.mxu0 %v1200
  %1345 = vmatpush1.msra.mxu0 %v1199
  %1346 = vmatprep.subr.mxu0 %v1202
  %1347 = vmatpush1.msra.mxu0 %v1201
  %1348 = vmatprep.subr.mxu0 0.0
  %1349 = vmatpush1.msra.mxu0 0.0
  %1350 = vmatprep.subr.mxu0 0.0
  %1351 = vmatpush1.msra.mxu0 0.0
  %1352 = vmatprep.subr.mxu0 0.0
  %1353 = vmatpush1.msra.mxu0 0.0
  %1354 = vmatprep.subr.mxu0 0.0
  %1355 = vmatpush1.msra.mxu0 0.0
  %1356 = vmatprep.subr.mxu0 0.0
  %1357 = vmatpush1.msra.mxu0 0.0
  %1358 = vmatprep.subr.mxu0 0.0
  %1359 = vmatpush1.msra.mxu0 0.0
  %1360 = vmatprep.subr.mxu0 0.0
  %1361 = vmatpush1.msra.mxu0 0.0
  %1362 = vmatprep.subr.mxu0 0.0
  %1363 = vmatpush1.msra.mxu0 0.0
  %1364 = vmatprep.subr.mxu0 0.0
  %1365 = vmatpush1.msra.mxu0 0.0
  %1366 = vmatprep.subr.mxu0 0.0
  %1367 = vmatpush1.msra.mxu0 0.0
  %1368 = vmatprep.subr.mxu0 0.0
  %1369 = vmatpush1.msra.mxu0 0.0
  %1370 = vmatprep.subr.mxu0 0.0
  %1371 = vmatpush1.msra.mxu0 0.0
  %1372 = vmatprep.subr.mxu0 0.0
  %1373 = vmatpush1.msra.mxu0 0.0
  %1374 = vmatprep.subr.mxu0 0.0
  %1375 = vmatpush1.msra.mxu0 0.0
  %1376 = vmatprep.subr.mxu0 0.0
  %1377 = vmatpush1.msra.mxu0 0.0
  %1378 = vmatprep.subr.mxu0 0.0
  %1379 = vmatpush1.msra.mxu0 0.0
  %1380 = vmatprep.mubr.f32.mxu0 0.0
  %1381 = vmatmul.mubr.f32.gmra.mrb[0].mxu0 %v1099
  %v1382 = vpop.f32.mrb[0].mxu0
  %v1383 = vadd.f32 %v1270, %v1382
  %v1384 = vpop.f32.mrb[0].mxu0
  %v1385 = vadd.f32 %v1272, %v1384
  %1386 = vmatprep.mubr.f32.mxu0 0.0
  %1387 = vmatmul.mubr.f32.gmra.mrb[0].mxu0 %v1100
  %v1388 = vpop.f32.mrb[0].mxu0
  %v1389 = vadd.f32 %v1276, %v1388
  %v1390 = vpop.f32.mrb[0].mxu0
  %v1391 = vadd.f32 %v1278, %v1390
  %1392 = vmatprep.mubr.f32.mxu0 0.0
  %1393 = vmatmul.mubr.f32.gmra.mrb[0].mxu0 %v1101
  %v1394 = vpop.f32.mrb[0].mxu0
  %v1395 = vadd.f32 %v1282, %v1394
  %v1396 = vpop.f32.mrb[0].mxu0
  %v1397 = vadd.f32 %v1284, %v1396
  %1398 = vmatprep.mubr.f32.mxu0 0.0
  %1399 = vmatmul.mubr.f32.gmra.mrb[0].mxu0 %v1102
  %v1400 = vpop.f32.mrb[0].mxu0
  %v1401 = vadd.f32 %v1288, %v1400
  %v1402 = vpop.f32.mrb[0].mxu0
  %v1403 = vadd.f32 %v1290, %v1402
  %1404 = vmatprep.mubr.f32.mxu0 0.0
  %1405 = vmatmul.mubr.f32.gmra.mrb[0].mxu0 %v1103
  %v1406 = vpop.f32.mrb[0].mxu0
  %v1407 = vadd.f32 %v1294, %v1406
  %v1408 = vpop.f32.mrb[0].mxu0
  %v1409 = vadd.f32 %v1296, %v1408
  %1410 = vmatprep.mubr.f32.mxu0 0.0
  %1411 = vmatmul.mubr.f32.gmra.mrb[0].mxu0 %v1104
  %v1412 = vpop.f32.mrb[0].mxu0
  %v1413 = vadd.f32 %v1300, %v1412
  %v1414 = vpop.f32.mrb[0].mxu0
  %v1415 = vadd.f32 %v1302, %v1414
  %1416 = vmatprep.mubr.f32.mxu0 0.0
  %1417 = vmatmul.mubr.f32.gmra.mrb[0].mxu0 %v1105
  %v1418 = vpop.f32.mrb[0].mxu0
  %v1419 = vadd.f32 %v1306, %v1418
  %v1420 = vpop.f32.mrb[0].mxu0
  %v1421 = vadd.f32 %v1308, %v1420
  %1422 = vmatprep.mubr.f32.mxu0 0.0
  %1423 = vmatmul.mubr.f32.gmra.mrb[0].mxu0 %v1106
  %v1424 = vpop.f32.mrb[0].mxu0
  %v1425 = vadd.f32 %v1312, %v1424
  %v1426 = vpop.f32.mrb[0].mxu0
  %v1427 = vadd.f32 %v1314, %v1426
  %1428 = vdwg.mxu0
  %v1429 = vadd.f32 %v1383, %v1389
  %v1430 = vadd.f32 %v1429, %v1395
  %v1431 = vadd.f32 %v1430, %v1401
  %v1432 = vadd.f32 %v1431, %v1407
  %v1433 = vadd.f32 %v1432, %v1413
  %v1434 = vadd.f32 %v1433, %v1419
  %v1435 = vadd.f32 %v1434, %v1425
  %v1436 = vrot.slane %v1435, 4
  %v1437 = vadd.f32 %v1435, %v1436
  %v1438 = vrot.slane %v1437, 2
  %v1439 = vadd.f32 %v1437, %v1438
  %v1440 = vrot.slane %v1439, 1
  %v1441 = vadd.f32 %v1439, %v1440
  %v1442 = vadd.f32 %v1385, %v1391
  %v1443 = vadd.f32 %v1442, %v1397
  %v1444 = vadd.f32 %v1443, %v1403
  %v1445 = vadd.f32 %v1444, %v1409
  %v1446 = vadd.f32 %v1445, %v1415
  %v1447 = vadd.f32 %v1446, %v1421
  %v1448 = vadd.f32 %v1447, %v1427
  %v1449 = vrot.slane %v1448, 4
  %v1450 = vadd.f32 %v1448, %v1449
  %v1451 = vrot.slane %v1450, 2
  %v1452 = vadd.f32 %v1450, %v1451
  %v1453 = vrot.slane %v1452, 1
  %v1454 = vadd.f32 %v1452, %v1453
  %v1455 = vmul.f32 %v1383, %v1383
  %v1456 = vmul.f32 %v1385, %v1385
  %v1457 = vmul.f32 %v1389, %v1389
  %v1458 = vmul.f32 %v1391, %v1391
  %v1459 = vmul.f32 %v1395, %v1395
  %v1460 = vmul.f32 %v1397, %v1397
  %v1461 = vmul.f32 %v1401, %v1401
  %v1462 = vmul.f32 %v1403, %v1403
  %v1463 = vmul.f32 %v1407, %v1407
  %v1464 = vmul.f32 %v1409, %v1409
  %v1465 = vmul.f32 %v1413, %v1413
  %v1466 = vmul.f32 %v1415, %v1415
  %v1467 = vmul.f32 %v1419, %v1419
  %v1468 = vmul.f32 %v1421, %v1421
  %v1469 = vmul.f32 %v1425, %v1425
  %v1470 = vmul.f32 %v1427, %v1427
  %v1471 = vadd.f32 %v1455, %v1457
  %v1472 = vadd.f32 %v1471, %v1459
  %v1473 = vadd.f32 %v1472, %v1461
  %v1474 = vadd.f32 %v1473, %v1463
  %v1475 = vadd.f32 %v1474, %v1465
  %v1476 = vadd.f32 %v1475, %v1467
  %v1477 = vadd.f32 %v1476, %v1469
  %v1478 = vrot.slane %v1477, 4
  %v1479 = vadd.f32 %v1477, %v1478
  %v1480 = vrot.slane %v1479, 2
  %v1481 = vadd.f32 %v1479, %v1480
  %v1482 = vrot.slane %v1481, 1
  %v1483 = vadd.f32 %v1481, %v1482
  %v1484 = vadd.f32 %v1456, %v1458
  %v1485 = vadd.f32 %v1484, %v1460
  %v1486 = vadd.f32 %v1485, %v1462
  %v1487 = vadd.f32 %v1486, %v1464
  %v1488 = vadd.f32 %v1487, %v1466
  %v1489 = vadd.f32 %v1488, %v1468
  %v1490 = vadd.f32 %v1489, %v1470
  %v1491 = vrot.slane %v1490, 4
  %v1492 = vadd.f32 %v1490, %v1491
  %v1493 = vrot.slane %v1492, 2
  %v1494 = vadd.f32 %v1492, %v1493
  %v1495 = vrot.slane %v1494, 1
  %v1496 = vadd.f32 %v1494, %v1495
  %v1497 = vadd.s32 %v163, 128
  %v1498 = vadd.s32 %v163, 136
  %v1499 = vadd.s32 %v163, 144
  %v1500 = vadd.s32 %v163, 152
  %v1501 = vadd.s32 %v163, 160
  %v1502 = vadd.s32 %v163, 168
  %v1503 = vadd.s32 %v163, 176
  %v1504 = vadd.s32 %v163, 184
  %v1505 = vadd.s32 %v163, 192
  %v1506 = vadd.s32 %v163, 200
  %v1507 = vadd.s32 %v163, 208
  %v1508 = vadd.s32 %v163, 216
  %v1509 = vadd.s32 %v163, 224
  %v1510 = vadd.s32 %v163, 232
  %v1511 = vadd.s32 %v163, 240
  %v1512 = vadd.s32 %v163, 248
  %vm1513 = vcmp.lt.s32.totalorder %v163, 0
  %v1514 = vsub.s32 0, %v163
  %v1515 = vsel %vm1513, %v1514, %v163
  %v1516 = vshrl.u32 %v1515, 3
  %v1517 = vand.u32 %v1515, 7
  %v1518 = vsub.s32 0, %v1517
  %v1519 = vsel %vm1513, %v1518, %v1517
  %vm1520 = vcmp.lt.s32.totalorder %v164, 0
  %v1521 = vsub.s32 0, %v164
  %v1522 = vsel %vm1520, %v1521, %v164
  %v1523 = vshrl.u32 %v1522, 3
  %v1524 = vand.u32 %v1522, 7
  %v1525 = vsub.s32 0, %v1524
  %v1526 = vsel %vm1520, %v1525, %v1524
  %vm1527 = vcmp.lt.s32.totalorder %v165, 0
  %v1528 = vsub.s32 0, %v165
  %v1529 = vsel %vm1527, %v1528, %v165
  %v1530 = vshrl.u32 %v1529, 3
  %v1531 = vand.u32 %v1529, 7
  %v1532 = vsub.s32 0, %v1531
  %v1533 = vsel %vm1527, %v1532, %v1531
  %vm1534 = vcmp.lt.s32.totalorder %v166, 0
  %v1535 = vsub.s32 0, %v166
  %v1536 = vsel %vm1534, %v1535, %v166
  %v1537 = vshrl.u32 %v1536, 3
  %v1538 = vand.u32 %v1536, 7
  %v1539 = vsub.s32 0, %v1538
  %v1540 = vsel %vm1534, %v1539, %v1538
  %vm1541 = vcmp.lt.s32.totalorder %v167, 0
  %v1542 = vsub.s32 0, %v167
  %v1543 = vsel %vm1541, %v1542, %v167
  %v1544 = vshrl.u32 %v1543, 3
  %v1545 = vand.u32 %v1543, 7
  %v1546 = vsub.s32 0, %v1545
  %v1547 = vsel %vm1541, %v1546, %v1545
  %vm1548 = vcmp.lt.s32.totalorder %v168, 0
  %v1549 = vsub.s32 0, %v168
  %v1550 = vsel %vm1548, %v1549, %v168
  %v1551 = vshrl.u32 %v1550, 3
  %v1552 = vand.u32 %v1550, 7
  %v1553 = vsub.s32 0, %v1552
  %v1554 = vsel %vm1548, %v1553, %v1552
  %vm1555 = vcmp.lt.s32.totalorder %v169, 0
  %v1556 = vsub.s32 0, %v169
  %v1557 = vsel %vm1555, %v1556, %v169
  %v1558 = vshrl.u32 %v1557, 3
  %v1559 = vand.u32 %v1557, 7
  %v1560 = vsub.s32 0, %v1559
  %v1561 = vsel %vm1555, %v1560, %v1559
  %vm1562 = vcmp.lt.s32.totalorder %v170, 0
  %v1563 = vsub.s32 0, %v170
  %v1564 = vsel %vm1562, %v1563, %v170
  %v1565 = vshrl.u32 %v1564, 3
  %v1566 = vand.u32 %v1564, 7
  %v1567 = vsub.s32 0, %v1566
  %v1568 = vsel %vm1562, %v1567, %v1566
  %vm1569 = vcmp.lt.s32.totalorder %v594, 0
  %v1570 = vsub.s32 0, %v594
  %v1571 = vsel %vm1569, %v1570, %v594
  %v1572 = vshrl.u32 %v1571, 3
  %v1573 = vand.u32 %v1571, 7
  %v1574 = vsub.s32 0, %v1573
  %v1575 = vsel %vm1569, %v1574, %v1573
  %vm1576 = vcmp.lt.s32.totalorder %v595, 0
  %v1577 = vsub.s32 0, %v595
  %v1578 = vsel %vm1576, %v1577, %v595
  %v1579 = vshrl.u32 %v1578, 3
  %v1580 = vand.u32 %v1578, 7
  %v1581 = vsub.s32 0, %v1580
  %v1582 = vsel %vm1576, %v1581, %v1580
  %vm1583 = vcmp.lt.s32.totalorder %v596, 0
  %v1584 = vsub.s32 0, %v596
  %v1585 = vsel %vm1583, %v1584, %v596
  %v1586 = vshrl.u32 %v1585, 3
  %v1587 = vand.u32 %v1585, 7
  %v1588 = vsub.s32 0, %v1587
  %v1589 = vsel %vm1583, %v1588, %v1587
  %vm1590 = vcmp.lt.s32.totalorder %v597, 0
  %v1591 = vsub.s32 0, %v597
  %v1592 = vsel %vm1590, %v1591, %v597
  %v1593 = vshrl.u32 %v1592, 3
  %v1594 = vand.u32 %v1592, 7
  %v1595 = vsub.s32 0, %v1594
  %v1596 = vsel %vm1590, %v1595, %v1594
  %vm1597 = vcmp.lt.s32.totalorder %v598, 0
  %v1598 = vsub.s32 0, %v598
  %v1599 = vsel %vm1597, %v1598, %v598
  %v1600 = vshrl.u32 %v1599, 3
  %v1601 = vand.u32 %v1599, 7
  %v1602 = vsub.s32 0, %v1601
  %v1603 = vsel %vm1597, %v1602, %v1601
  %vm1604 = vcmp.lt.s32.totalorder %v599, 0
  %v1605 = vsub.s32 0, %v599
  %v1606 = vsel %vm1604, %v1605, %v599
  %v1607 = vshrl.u32 %v1606, 3
  %v1608 = vand.u32 %v1606, 7
  %v1609 = vsub.s32 0, %v1608
  %v1610 = vsel %vm1604, %v1609, %v1608
  %vm1611 = vcmp.lt.s32.totalorder %v600, 0
  %v1612 = vsub.s32 0, %v600
  %v1613 = vsel %vm1611, %v1612, %v600
  %v1614 = vshrl.u32 %v1613, 3
  %v1615 = vand.u32 %v1613, 7
  %v1616 = vsub.s32 0, %v1615
  %v1617 = vsel %vm1611, %v1616, %v1615
  %vm1618 = vcmp.lt.s32.totalorder %v601, 0
  %v1619 = vsub.s32 0, %v601
  %v1620 = vsel %vm1618, %v1619, %v601
  %v1621 = vshrl.u32 %v1620, 3
  %v1622 = vand.u32 %v1620, 7
  %v1623 = vsub.s32 0, %v1622
  %v1624 = vsel %vm1618, %v1623, %v1622
  %vm1625 = vcmp.lt.s32.totalorder %v1497, 0
  %v1626 = vsub.s32 0, %v1497
  %v1627 = vsel %vm1625, %v1626, %v1497
  %v1628 = vshrl.u32 %v1627, 3
  %v1629 = vand.u32 %v1627, 7
  %v1630 = vsub.s32 0, %v1629
  %v1631 = vsel %vm1625, %v1630, %v1629
  %vm1632 = vcmp.lt.s32.totalorder %v1498, 0
  %v1633 = vsub.s32 0, %v1498
  %v1634 = vsel %vm1632, %v1633, %v1498
  %v1635 = vshrl.u32 %v1634, 3
  %v1636 = vand.u32 %v1634, 7
  %v1637 = vsub.s32 0, %v1636
  %v1638 = vsel %vm1632, %v1637, %v1636
  %vm1639 = vcmp.lt.s32.totalorder %v1499, 0
  %v1640 = vsub.s32 0, %v1499
  %v1641 = vsel %vm1639, %v1640, %v1499
  %v1642 = vshrl.u32 %v1641, 3
  %v1643 = vand.u32 %v1641, 7
  %v1644 = vsub.s32 0, %v1643
  %v1645 = vsel %vm1639, %v1644, %v1643
  %vm1646 = vcmp.lt.s32.totalorder %v1500, 0
  %v1647 = vsub.s32 0, %v1500
  %v1648 = vsel %vm1646, %v1647, %v1500
  %v1649 = vshrl.u32 %v1648, 3
  %v1650 = vand.u32 %v1648, 7
  %v1651 = vsub.s32 0, %v1650
  %v1652 = vsel %vm1646, %v1651, %v1650
  %vm1653 = vcmp.lt.s32.totalorder %v1501, 0
  %v1654 = vsub.s32 0, %v1501
  %v1655 = vsel %vm1653, %v1654, %v1501
  %v1656 = vshrl.u32 %v1655, 3
  %v1657 = vand.u32 %v1655, 7
  %v1658 = vsub.s32 0, %v1657
  %v1659 = vsel %vm1653, %v1658, %v1657
  %vm1660 = vcmp.lt.s32.totalorder %v1502, 0
  %v1661 = vsub.s32 0, %v1502
  %v1662 = vsel %vm1660, %v1661, %v1502
  %v1663 = vshrl.u32 %v1662, 3
  %v1664 = vand.u32 %v1662, 7
  %v1665 = vsub.s32 0, %v1664
  %v1666 = vsel %vm1660, %v1665, %v1664
  %vm1667 = vcmp.lt.s32.totalorder %v1503, 0
  %v1668 = vsub.s32 0, %v1503
  %v1669 = vsel %vm1667, %v1668, %v1503
  %v1670 = vshrl.u32 %v1669, 3
  %v1671 = vand.u32 %v1669, 7
  %v1672 = vsub.s32 0, %v1671
  %v1673 = vsel %vm1667, %v1672, %v1671
  %vm1674 = vcmp.lt.s32.totalorder %v1504, 0
  %v1675 = vsub.s32 0, %v1504
  %v1676 = vsel %vm1674, %v1675, %v1504
  %v1677 = vshrl.u32 %v1676, 3
  %v1678 = vand.u32 %v1676, 7
  %v1679 = vsub.s32 0, %v1678
  %v1680 = vsel %vm1674, %v1679, %v1678
  %vm1681 = vcmp.lt.s32.totalorder %v1505, 0
  %v1682 = vsub.s32 0, %v1505
  %v1683 = vsel %vm1681, %v1682, %v1505
  %v1684 = vshrl.u32 %v1683, 3
  %v1685 = vand.u32 %v1683, 7
  %v1686 = vsub.s32 0, %v1685
  %v1687 = vsel %vm1681, %v1686, %v1685
  %vm1688 = vcmp.lt.s32.totalorder %v1506, 0
  %v1689 = vsub.s32 0, %v1506
  %v1690 = vsel %vm1688, %v1689, %v1506
  %v1691 = vshrl.u32 %v1690, 3
  %v1692 = vand.u32 %v1690, 7
  %v1693 = vsub.s32 0, %v1692
  %v1694 = vsel %vm1688, %v1693, %v1692
  %vm1695 = vcmp.lt.s32.totalorder %v1507, 0
  %v1696 = vsub.s32 0, %v1507
  %v1697 = vsel %vm1695, %v1696, %v1507
  %v1698 = vshrl.u32 %v1697, 3
  %v1699 = vand.u32 %v1697, 7
  %v1700 = vsub.s32 0, %v1699
  %v1701 = vsel %vm1695, %v1700, %v1699
  %vm1702 = vcmp.lt.s32.totalorder %v1508, 0
  %v1703 = vsub.s32 0, %v1508
  %v1704 = vsel %vm1702, %v1703, %v1508
  %v1705 = vshrl.u32 %v1704, 3
  %v1706 = vand.u32 %v1704, 7
  %v1707 = vsub.s32 0, %v1706
  %v1708 = vsel %vm1702, %v1707, %v1706
  %vm1709 = vcmp.lt.s32.totalorder %v1509, 0
  %v1710 = vsub.s32 0, %v1509
  %v1711 = vsel %vm1709, %v1710, %v1509
  %v1712 = vshrl.u32 %v1711, 3
  %v1713 = vand.u32 %v1711, 7
  %v1714 = vsub.s32 0, %v1713
  %v1715 = vsel %vm1709, %v1714, %v1713
  %vm1716 = vcmp.lt.s32.totalorder %v1510, 0
  %v1717 = vsub.s32 0, %v1510
  %v1718 = vsel %vm1716, %v1717, %v1510
  %v1719 = vshrl.u32 %v1718, 3
  %v1720 = vand.u32 %v1718, 7
  %v1721 = vsub.s32 0, %v1720
  %v1722 = vsel %vm1716, %v1721, %v1720
  %vm1723 = vcmp.lt.s32.totalorder %v1511, 0
  %v1724 = vsub.s32 0, %v1511
  %v1725 = vsel %vm1723, %v1724, %v1511
  %v1726 = vshrl.u32 %v1725, 3
  %v1727 = vand.u32 %v1725, 7
  %v1728 = vsub.s32 0, %v1727
  %v1729 = vsel %vm1723, %v1728, %v1727
  %vm1730 = vcmp.lt.s32.totalorder %v1512, 0
  %v1731 = vsub.s32 0, %v1512
  %v1732 = vsel %vm1730, %v1731, %v1512
  %v1733 = vshrl.u32 %v1732, 3
  %v1734 = vand.u32 %v1732, 7
  %v1735 = vsub.s32 0, %v1734
  %v1736 = vsel %vm1730, %v1735, %v1734
  %vm1737 = vcmp.ne.s32.totalorder %v1519, 0
  %vm1738 = vcmp.ne.s32.totalorder %v1526, 0
  %vm1739 = vcmp.ne.s32.totalorder %v1533, 0
  %vm1740 = vcmp.ne.s32.totalorder %v1540, 0
  %vm1741 = vcmp.ne.s32.totalorder %v1547, 0
  %vm1742 = vcmp.ne.s32.totalorder %v1554, 0
  %vm1743 = vcmp.ne.s32.totalorder %v1561, 0
  %vm1744 = vcmp.ne.s32.totalorder %v1568, 0
  %vm1745 = vcmp.ne.s32.totalorder %v1575, 0
  %vm1746 = vcmp.ne.s32.totalorder %v1582, 0
  %vm1747 = vcmp.ne.s32.totalorder %v1589, 0
  %vm1748 = vcmp.ne.s32.totalorder %v1596, 0
  %vm1749 = vcmp.ne.s32.totalorder %v1603, 0
  %vm1750 = vcmp.ne.s32.totalorder %v1610, 0
  %vm1751 = vcmp.ne.s32.totalorder %v1617, 0
  %vm1752 = vcmp.ne.s32.totalorder %v1624, 0
  %vm1753 = vcmp.ne.s32.totalorder %v1631, 0
  %vm1754 = vcmp.ne.s32.totalorder %v1638, 0
  %vm1755 = vcmp.ne.s32.totalorder %v1645, 0
  %vm1756 = vcmp.ne.s32.totalorder %v1652, 0
  %vm1757 = vcmp.ne.s32.totalorder %v1659, 0
  %vm1758 = vcmp.ne.s32.totalorder %v1666, 0
  %vm1759 = vcmp.ne.s32.totalorder %v1673, 0
  %vm1760 = vcmp.ne.s32.totalorder %v1680, 0
  %vm1761 = vcmp.ne.s32.totalorder %v1687, 0
  %vm1762 = vcmp.ne.s32.totalorder %v1694, 0
  %vm1763 = vcmp.ne.s32.totalorder %v1701, 0
  %vm1764 = vcmp.ne.s32.totalorder %v1708, 0
  %vm1765 = vcmp.ne.s32.totalorder %v1715, 0
  %vm1766 = vcmp.ne.s32.totalorder %v1722, 0
  %vm1767 = vcmp.ne.s32.totalorder %v1729, 0
  %vm1768 = vcmp.ne.s32.totalorder %v1736, 0
  %vm1769 = vcmp.lt.s32.totalorder %v1519, 0
  %vm1770 = vcmp.lt.s32.totalorder %v1526, 0
  %vm1771 = vcmp.lt.s32.totalorder %v1533, 0
  %vm1772 = vcmp.lt.s32.totalorder %v1540, 0
  %vm1773 = vcmp.lt.s32.totalorder %v1547, 0
  %vm1774 = vcmp.lt.s32.totalorder %v1554, 0
  %vm1775 = vcmp.lt.s32.totalorder %v1561, 0
  %vm1776 = vcmp.lt.s32.totalorder %v1568, 0
  %vm1777 = vcmp.lt.s32.totalorder %v1575, 0
  %vm1778 = vcmp.lt.s32.totalorder %v1582, 0
  %vm1779 = vcmp.lt.s32.totalorder %v1589, 0
  %vm1780 = vcmp.lt.s32.totalorder %v1596, 0
  %vm1781 = vcmp.lt.s32.totalorder %v1603, 0
  %vm1782 = vcmp.lt.s32.totalorder %v1610, 0
  %vm1783 = vcmp.lt.s32.totalorder %v1617, 0
  %vm1784 = vcmp.lt.s32.totalorder %v1624, 0
  %vm1785 = vcmp.lt.s32.totalorder %v1631, 0
  %vm1786 = vcmp.lt.s32.totalorder %v1638, 0
  %vm1787 = vcmp.lt.s32.totalorder %v1645, 0
  %vm1788 = vcmp.lt.s32.totalorder %v1652, 0
  %vm1789 = vcmp.lt.s32.totalorder %v1659, 0
  %vm1790 = vcmp.lt.s32.totalorder %v1666, 0
  %vm1791 = vcmp.lt.s32.totalorder %v1673, 0
  %vm1792 = vcmp.lt.s32.totalorder %v1680, 0
  %vm1793 = vcmp.lt.s32.totalorder %v1687, 0
  %vm1794 = vcmp.lt.s32.totalorder %v1694, 0
  %vm1795 = vcmp.lt.s32.totalorder %v1701, 0
  %vm1796 = vcmp.lt.s32.totalorder %v1708, 0
  %vm1797 = vcmp.lt.s32.totalorder %v1715, 0
  %vm1798 = vcmp.lt.s32.totalorder %v1722, 0
  %vm1799 = vcmp.lt.s32.totalorder %v1729, 0
  %vm1800 = vcmp.lt.s32.totalorder %v1736, 0
  %vm1801 = vmand %vm1769, %vm1737
  %vm1802 = vmand %vm1770, %vm1738
  %vm1803 = vmand %vm1771, %vm1739
  %vm1804 = vmand %vm1772, %vm1740
  %vm1805 = vmand %vm1773, %vm1741
  %vm1806 = vmand %vm1774, %vm1742
  %vm1807 = vmand %vm1775, %vm1743
  %vm1808 = vmand %vm1776, %vm1744
  %vm1809 = vmand %vm1777, %vm1745
  %vm1810 = vmand %vm1778, %vm1746
  %vm1811 = vmand %vm1779, %vm1747
  %vm1812 = vmand %vm1780, %vm1748
  %vm1813 = vmand %vm1781, %vm1749
  %vm1814 = vmand %vm1782, %vm1750
  %vm1815 = vmand %vm1783, %vm1751
  %vm1816 = vmand %vm1784, %vm1752
  %vm1817 = vmand %vm1785, %vm1753
  %vm1818 = vmand %vm1786, %vm1754
  %vm1819 = vmand %vm1787, %vm1755
  %vm1820 = vmand %vm1788, %vm1756
  %vm1821 = vmand %vm1789, %vm1757
  %vm1822 = vmand %vm1790, %vm1758
  %vm1823 = vmand %vm1791, %vm1759
  %vm1824 = vmand %vm1792, %vm1760
  %vm1825 = vmand %vm1793, %vm1761
  %vm1826 = vmand %vm1794, %vm1762
  %vm1827 = vmand %vm1795, %vm1763
  %vm1828 = vmand %vm1796, %vm1764
  %vm1829 = vmand %vm1797, %vm1765
  %vm1830 = vmand %vm1798, %vm1766
  %vm1831 = vmand %vm1799, %vm1767
  %vm1832 = vmand %vm1800, %vm1768
  %v1833 = vadd.s32 %v1519, 8
  %v1834 = vadd.s32 %v1526, 8
  %v1835 = vadd.s32 %v1533, 8
  %v1836 = vadd.s32 %v1540, 8
  %v1837 = vadd.s32 %v1547, 8
  %v1838 = vadd.s32 %v1554, 8
  %v1839 = vadd.s32 %v1561, 8
  %v1840 = vadd.s32 %v1568, 8
  %v1841 = vadd.s32 %v1575, 8
  %v1842 = vadd.s32 %v1582, 8
  %v1843 = vadd.s32 %v1589, 8
  %v1844 = vadd.s32 %v1596, 8
  %v1845 = vadd.s32 %v1603, 8
  %v1846 = vadd.s32 %v1610, 8
  %v1847 = vadd.s32 %v1617, 8
  %v1848 = vadd.s32 %v1624, 8
  %v1849 = vadd.s32 %v1631, 8
  %v1850 = vadd.s32 %v1638, 8
  %v1851 = vadd.s32 %v1645, 8
  %v1852 = vadd.s32 %v1652, 8
  %v1853 = vadd.s32 %v1659, 8
  %v1854 = vadd.s32 %v1666, 8
  %v1855 = vadd.s32 %v1673, 8
  %v1856 = vadd.s32 %v1680, 8
  %v1857 = vadd.s32 %v1687, 8
  %v1858 = vadd.s32 %v1694, 8
  %v1859 = vadd.s32 %v1701, 8
  %v1860 = vadd.s32 %v1708, 8
  %v1861 = vadd.s32 %v1715, 8
  %v1862 = vadd.s32 %v1722, 8
  %v1863 = vadd.s32 %v1729, 8
  %v1864 = vadd.s32 %v1736, 8
  %v1865 = vsel %vm1801, %v1833, %v1519
  %v1866 = vsel %vm1802, %v1834, %v1526
  %v1867 = vsel %vm1803, %v1835, %v1533
  %v1868 = vsel %vm1804, %v1836, %v1540
  %v1869 = vsel %vm1805, %v1837, %v1547
  %v1870 = vsel %vm1806, %v1838, %v1554
  %v1871 = vsel %vm1807, %v1839, %v1561
  %v1872 = vsel %vm1808, %v1840, %v1568
  %v1873 = vsel %vm1809, %v1841, %v1575
  %v1874 = vsel %vm1810, %v1842, %v1582
  %v1875 = vsel %vm1811, %v1843, %v1589
  %v1876 = vsel %vm1812, %v1844, %v1596
  %v1877 = vsel %vm1813, %v1845, %v1603
  %v1878 = vsel %vm1814, %v1846, %v1610
  %v1879 = vsel %vm1815, %v1847, %v1617
  %v1880 = vsel %vm1816, %v1848, %v1624
  %v1881 = vsel %vm1817, %v1849, %v1631
  %v1882 = vsel %vm1818, %v1850, %v1638
  %v1883 = vsel %vm1819, %v1851, %v1645
  %v1884 = vsel %vm1820, %v1852, %v1652
  %v1885 = vsel %vm1821, %v1853, %v1659
  %v1886 = vsel %vm1822, %v1854, %v1666
  %v1887 = vsel %vm1823, %v1855, %v1673
  %v1888 = vsel %vm1824, %v1856, %v1680
  %v1889 = vsel %vm1825, %v1857, %v1687
  %v1890 = vsel %vm1826, %v1858, %v1694
  %v1891 = vsel %vm1827, %v1859, %v1701
  %v1892 = vsel %vm1828, %v1860, %v1708
  %v1893 = vsel %vm1829, %v1861, %v1715
  %v1894 = vsel %vm1830, %v1862, %v1722
  %v1895 = vsel %vm1831, %v1863, %v1729
  %v1896 = vsel %vm1832, %v1864, %v1736
  %vm1897 = vcmp.eq.s32.totalorder %v1865, %v603
  %vm1898 = vcmp.eq.s32.totalorder %v1866, %v603
  %vm1899 = vcmp.eq.s32.totalorder %v1867, %v603
  %vm1900 = vcmp.eq.s32.totalorder %v1868, %v603
  %vm1901 = vcmp.eq.s32.totalorder %v1869, %v603
  %vm1902 = vcmp.eq.s32.totalorder %v1870, %v603
  %vm1903 = vcmp.eq.s32.totalorder %v1871, %v603
  %vm1904 = vcmp.eq.s32.totalorder %v1872, %v603
  %vm1905 = vcmp.eq.s32.totalorder %v1873, %v603
  %vm1906 = vcmp.eq.s32.totalorder %v1874, %v603
  %vm1907 = vcmp.eq.s32.totalorder %v1875, %v603
  %vm1908 = vcmp.eq.s32.totalorder %v1876, %v603
  %vm1909 = vcmp.eq.s32.totalorder %v1877, %v603
  %vm1910 = vcmp.eq.s32.totalorder %v1878, %v603
  %vm1911 = vcmp.eq.s32.totalorder %v1879, %v603
  %vm1912 = vcmp.eq.s32.totalorder %v1880, %v603
  %vm1913 = vcmp.eq.s32.totalorder %v1881, %v603
  %vm1914 = vcmp.eq.s32.totalorder %v1882, %v603
  %vm1915 = vcmp.eq.s32.totalorder %v1883, %v603
  %vm1916 = vcmp.eq.s32.totalorder %v1884, %v603
  %vm1917 = vcmp.eq.s32.totalorder %v1885, %v603
  %vm1918 = vcmp.eq.s32.totalorder %v1886, %v603
  %vm1919 = vcmp.eq.s32.totalorder %v1887, %v603
  %vm1920 = vcmp.eq.s32.totalorder %v1888, %v603
  %vm1921 = vcmp.eq.s32.totalorder %v1889, %v603
  %vm1922 = vcmp.eq.s32.totalorder %v1890, %v603
  %vm1923 = vcmp.eq.s32.totalorder %v1891, %v603
  %vm1924 = vcmp.eq.s32.totalorder %v1892, %v603
  %vm1925 = vcmp.eq.s32.totalorder %v1893, %v603
  %vm1926 = vcmp.eq.s32.totalorder %v1894, %v603
  %vm1927 = vcmp.eq.s32.totalorder %v1895, %v603
  %vm1928 = vcmp.eq.s32.totalorder %v1896, %v603
  %v1929 = vsel %vm1897, 1, 0
  %v1930 = vsel %vm1898, 1, 0
  %v1931 = vsel %vm1899, 1, 0
  %v1932 = vsel %vm1900, 1, 0
  %v1933 = vsel %vm1901, 1, 0
  %v1934 = vsel %vm1902, 1, 0
  %v1935 = vsel %vm1903, 1, 0
  %v1936 = vsel %vm1904, 1, 0
  %v1937 = vsel %vm1905, 1, 0
  %v1938 = vsel %vm1906, 1, 0
  %v1939 = vsel %vm1907, 1, 0
  %v1940 = vsel %vm1908, 1, 0
  %v1941 = vsel %vm1909, 1, 0
  %v1942 = vsel %vm1910, 1, 0
  %v1943 = vsel %vm1911, 1, 0
  %v1944 = vsel %vm1912, 1, 0
  %v1945 = vsel %vm1913, 1, 0
  %v1946 = vsel %vm1914, 1, 0
  %v1947 = vsel %vm1915, 1, 0
  %v1948 = vsel %vm1916, 1, 0
  %v1949 = vsel %vm1917, 1, 0
  %v1950 = vsel %vm1918, 1, 0
  %v1951 = vsel %vm1919, 1, 0
  %v1952 = vsel %vm1920, 1, 0
  %v1953 = vsel %vm1921, 1, 0
  %v1954 = vsel %vm1922, 1, 0
  %v1955 = vsel %vm1923, 1, 0
  %v1956 = vsel %vm1924, 1, 0
  %v1957 = vsel %vm1925, 1, 0
  %v1958 = vsel %vm1926, 1, 0
  %v1959 = vsel %vm1927, 1, 0
  %v1960 = vsel %vm1928, 1, 0
  %v1961 = vcvt.s32.f32 %v1929
  %v1962 = vcvt.s32.f32 %v1930
  %v1963 = vcvt.s32.f32 %v1931
  %v1964 = vcvt.s32.f32 %v1932
  %v1965 = vcvt.s32.f32 %v1933
  %v1966 = vcvt.s32.f32 %v1934
  %v1967 = vcvt.s32.f32 %v1935
  %v1968 = vcvt.s32.f32 %v1936
  %v1969 = vcvt.s32.f32 %v1937
  %v1970 = vcvt.s32.f32 %v1938
  %v1971 = vcvt.s32.f32 %v1939
  %v1972 = vcvt.s32.f32 %v1940
  %v1973 = vcvt.s32.f32 %v1941
  %v1974 = vcvt.s32.f32 %v1942
  %v1975 = vcvt.s32.f32 %v1943
  %v1976 = vcvt.s32.f32 %v1944
  %v1977 = vcvt.s32.f32 %v1945
  %v1978 = vcvt.s32.f32 %v1946
  %v1979 = vcvt.s32.f32 %v1947
  %v1980 = vcvt.s32.f32 %v1948
  %v1981 = vcvt.s32.f32 %v1949
  %v1982 = vcvt.s32.f32 %v1950
  %v1983 = vcvt.s32.f32 %v1951
  %v1984 = vcvt.s32.f32 %v1952
  %v1985 = vcvt.s32.f32 %v1953
  %v1986 = vcvt.s32.f32 %v1954
  %v1987 = vcvt.s32.f32 %v1955
  %v1988 = vcvt.s32.f32 %v1956
  %v1989 = vcvt.s32.f32 %v1957
  %v1990 = vcvt.s32.f32 %v1958
  %v1991 = vcvt.s32.f32 %v1959
  %v1992 = vcvt.s32.f32 %v1960
  %v1993 = vsel %vm844, %v1441, %v1483
  %v1994 = vsel %vm844, %v1454, %v1496
  %1995 = vmatprep.subr.mxu0 0.0
  %1996 = vmatpush1.msra.mxu0 %v1961
  %1997 = vmatprep.subr.mxu0 0.0
  %1998 = vmatpush1.msra.mxu0 %v1962
  %1999 = vmatprep.subr.mxu0 0.0
  %2000 = vmatpush1.msra.mxu0 %v1963
  %2001 = vmatprep.subr.mxu0 0.0
  %2002 = vmatpush1.msra.mxu0 %v1964
  %2003 = vmatprep.subr.mxu0 0.0
  %2004 = vmatpush1.msra.mxu0 %v1965
  %2005 = vmatprep.subr.mxu0 0.0
  %2006 = vmatpush1.msra.mxu0 %v1966
  %2007 = vmatprep.subr.mxu0 0.0
  %2008 = vmatpush1.msra.mxu0 %v1967
  %2009 = vmatprep.subr.mxu0 0.0
  %2010 = vmatpush1.msra.mxu0 %v1968
  %2011 = vmatprep.subr.mxu0 0.0
  %2012 = vmatpush1.msra.mxu0 %v1969
  %2013 = vmatprep.subr.mxu0 0.0
  %2014 = vmatpush1.msra.mxu0 %v1970
  %2015 = vmatprep.subr.mxu0 0.0
  %2016 = vmatpush1.msra.mxu0 %v1971
  %2017 = vmatprep.subr.mxu0 0.0
  %2018 = vmatpush1.msra.mxu0 %v1972
  %2019 = vmatprep.subr.mxu0 0.0
  %2020 = vmatpush1.msra.mxu0 %v1973
  %2021 = vmatprep.subr.mxu0 0.0
  %2022 = vmatpush1.msra.mxu0 %v1974
  %2023 = vmatprep.subr.mxu0 0.0
  %2024 = vmatpush1.msra.mxu0 %v1975
  %2025 = vmatprep.subr.mxu0 0.0
  %2026 = vmatpush1.msra.mxu0 %v1976
  %2027 = vmatprep.subr.mxu0 0.0
  %2028 = vmatpush1.msra.mxu0 %v1977
  %2029 = vmatprep.subr.mxu0 0.0
  %2030 = vmatpush1.msra.mxu0 %v1978
  %2031 = vmatprep.subr.mxu0 0.0
  %2032 = vmatpush1.msra.mxu0 %v1979
  %2033 = vmatprep.subr.mxu0 0.0
  %2034 = vmatpush1.msra.mxu0 %v1980
  %2035 = vmatprep.subr.mxu0 0.0
  %2036 = vmatpush1.msra.mxu0 %v1981
  %2037 = vmatprep.subr.mxu0 0.0
  %2038 = vmatpush1.msra.mxu0 %v1982
  %2039 = vmatprep.subr.mxu0 0.0
  %2040 = vmatpush1.msra.mxu0 %v1983
  %2041 = vmatprep.subr.mxu0 0.0
  %2042 = vmatpush1.msra.mxu0 %v1984
  %2043 = vmatprep.subr.mxu0 0.0
  %2044 = vmatpush1.msra.mxu0 %v1985
  %2045 = vmatprep.subr.mxu0 0.0
  %2046 = vmatpush1.msra.mxu0 %v1986
  %2047 = vmatprep.subr.mxu0 0.0
  %2048 = vmatpush1.msra.mxu0 %v1987
  %2049 = vmatprep.subr.mxu0 0.0
  %2050 = vmatpush1.msra.mxu0 %v1988
  %2051 = vmatprep.subr.mxu0 0.0
  %2052 = vmatpush1.msra.mxu0 %v1989
  %2053 = vmatprep.subr.mxu0 0.0
  %2054 = vmatpush1.msra.mxu0 %v1990
  %2055 = vmatprep.subr.mxu0 0.0
  %2056 = vmatpush1.msra.mxu0 %v1991
  %2057 = vmatprep.subr.mxu0 0.0
  %2058 = vmatpush1.msra.mxu0 %v1992
  %2059 = vmatprep.mubr.f32.mxu0 %v1994
  %2060 = vmatmul.mubr.f32.gmra.mrb[0].mxu0 %v1993
  %v2061 = vpop.f32.mrb[0].mxu0
  %v2062 = vadd.f32 0.0, %v2061
  %v2063 = vpop.f32.mrb[0].mxu0
  %2064 = vdwg.mxu0
  %v2065 = vmul.f32 %v2062, 0.00048828125
  %v2066 = vmul.f32 %v2065, %v2065
  %v2068 = vrot.slane %v2066, 7
  %v2070 = vsub.f32 %v2065, %v2068
  %v2071 = vadd.f32 %v2070, 1e-05
  %v2072 = vrsqrt.pop %v2071
  %v2074 = vrot.slane %v2072, 7
  %v2076 = vmul.f32 %v315, %v2074
  %v2078 = vrot.slane %v2076, 2
  %v2080 = vmul.f32 %v2065, %v2078
  %v2082 = vrot.slane %v2080, 5
  %v2084 = vsub.f32 %v315, %v2082
  %v2085 = vadd.s32 %v603, 128
  %vm2086 = vcmp.lt.s32.totalorder %v603, 0
  %v2087 = vsub.s32 0, %v603
  %v2088 = vsel %vm2086, %v2087, %v603
  %v2089 = vshrl.u32 %v2088, 3
  %v2090 = vand.u32 %v2088, 7
  %v2091 = vsub.s32 0, %v2090
  %v2092 = vsel %vm2086, %v2091, %v2090
  %vm2093 = vcmp.lt.s32.totalorder %v2085, 0
  %v2094 = vsub.s32 0, %v2085
  %v2095 = vsel %vm2093, %v2094, %v2085
  %v2096 = vshrl.u32 %v2095, 3
  %v2097 = vand.u32 %v2095, 7
  %v2098 = vsub.s32 0, %v2097
  %v2099 = vsel %vm2093, %v2098, %v2097
  %vm2100 = vcmp.ne.s32.totalorder %v2092, 0
  %vm2101 = vcmp.ne.s32.totalorder %v2099, 0
  %vm2102 = vcmp.lt.s32.totalorder %v2092, 0
  %vm2103 = vcmp.lt.s32.totalorder %v2099, 0
  %vm2104 = vmand %vm2102, %vm2100
  %vm2105 = vmand %vm2103, %vm2101
  %v2106 = vadd.s32 %v2092, 8
  %v2107 = vadd.s32 %v2099, 8
  %v2108 = vsel %vm2104, %v2106, %v2092
  %v2109 = vsel %vm2105, %v2107, %v2099
  %vm2110 = vcmp.eq.s32.totalorder %v163, %v2108
  %vm2111 = vcmp.eq.s32.totalorder %v163, %v2109
  %v2112 = vsel %vm2110, 1, 0
  %v2113 = vsel %vm2111, 1, 0
  %v2114 = vcvt.s32.f32 %v2112
  %v2115 = vcvt.s32.f32 %v2113
  %v2117 = vrot.slane %v2084, 2
  %v2119 = vsel %vm844, %v2078, %v2117
  %vm2120 = vcmask 64512
  %v2122 = vsel %vm2120, %v2119, 0
  %2124 = vmatprep.subr.mxu0 %v2115
  %2125 = vmatpush1.msra.mxu0 %v2114
  %2126 = vmatprep.subr.mxu0 0.0
  %2127 = vmatpush1.msra.mxu0 0.0
  %2128 = vmatprep.subr.mxu0 0.0
  %2129 = vmatpush1.msra.mxu0 0.0
  %2130 = vmatprep.subr.mxu0 0.0
  %2131 = vmatpush1.msra.mxu0 0.0
  %2132 = vmatprep.subr.mxu0 0.0
  %2133 = vmatpush1.msra.mxu0 0.0
  %2134 = vmatprep.subr.mxu0 0.0
  %2135 = vmatpush1.msra.mxu0 0.0
  %2136 = vmatprep.subr.mxu0 0.0
  %2137 = vmatpush1.msra.mxu0 0.0
  %2138 = vmatprep.subr.mxu0 0.0
  %2139 = vmatpush1.msra.mxu0 0.0
  %2140 = vmatprep.subr.mxu0 0.0
  %2141 = vmatpush1.msra.mxu0 0.0
  %2142 = vmatprep.subr.mxu0 0.0
  %2143 = vmatpush1.msra.mxu0 0.0
  %2144 = vmatprep.subr.mxu0 0.0
  %2145 = vmatpush1.msra.mxu0 0.0
  %2146 = vmatprep.subr.mxu0 0.0
  %2147 = vmatpush1.msra.mxu0 0.0
  %2148 = vmatprep.subr.mxu0 0.0
  %2149 = vmatpush1.msra.mxu0 0.0
  %2150 = vmatprep.subr.mxu0 0.0
  %2151 = vmatpush1.msra.mxu0 0.0
  %2152 = vmatprep.subr.mxu0 0.0
  %2153 = vmatpush1.msra.mxu0 0.0
  %2154 = vmatprep.subr.mxu0 0.0
  %2155 = vmatpush1.msra.mxu0 0.0
  %2156 = vmatprep.subr.mxu0 0.0
  %2157 = vmatpush1.msra.mxu0 0.0
  %2158 = vmatprep.subr.mxu0 0.0
  %2159 = vmatpush1.msra.mxu0 0.0
  %2160 = vmatprep.subr.mxu0 0.0
  %2161 = vmatpush1.msra.mxu0 0.0
  %2162 = vmatprep.subr.mxu0 0.0
  %2163 = vmatpush1.msra.mxu0 0.0
  %2164 = vmatprep.subr.mxu0 0.0
  %2165 = vmatpush1.msra.mxu0 0.0
  %2166 = vmatprep.subr.mxu0 0.0
  %2167 = vmatpush1.msra.mxu0 0.0
  %2168 = vmatprep.subr.mxu0 0.0
  %2169 = vmatpush1.msra.mxu0 0.0
  %2170 = vmatprep.subr.mxu0 0.0
  %2171 = vmatpush1.msra.mxu0 0.0
  %2172 = vmatprep.subr.mxu0 0.0
  %2173 = vmatpush1.msra.mxu0 0.0
  %2174 = vmatprep.subr.mxu0 0.0
  %2175 = vmatpush1.msra.mxu0 0.0
  %2176 = vmatprep.subr.mxu0 0.0
  %2177 = vmatpush1.msra.mxu0 0.0
  %2178 = vmatprep.subr.mxu0 0.0
  %2179 = vmatpush1.msra.mxu0 0.0
  %2180 = vmatprep.subr.mxu0 0.0
  %2181 = vmatpush1.msra.mxu0 0.0
  %2182 = vmatprep.subr.mxu0 0.0
  %2183 = vmatpush1.msra.mxu0 0.0
  %2184 = vmatprep.subr.mxu0 0.0
  %2185 = vmatpush1.msra.mxu0 0.0
  %2186 = vmatprep.subr.mxu0 0.0
  %2187 = vmatpush1.msra.mxu0 0.0
  %2188 = vmatprep.mubr.f32.mxu0 0.0
  %2189 = vmatmul.mubr.f32.gmra.mrb[0].mxu0 %v2122
  %v2190 = vpop.f32.mrb[0].mxu0
  %v2191 = vadd.f32 0.0, %v2190
  %v2192 = vpop.f32.mrb[0].mxu0
  %v2193 = vadd.f32 0.0, %v2192
  %2194 = vdwg.mxu0
  %v2195 = vlaneseq
  %v2196 = vshrl.u32 %v2195, 7
  %v2197 = vsub.s32 0, %v2196
  %v2198 = vrot.slane %v2191, %v2197
  %v2199 = vlaneseq
  %v2200 = vshrl.u32 %v2199, 7
  %v2201 = vsub.s32 0, %v2200
  %v2202 = vrot.slane %v2193, %v2201
  %v2203 = vmul.f32 %v1383, %v2198
  %v2204 = vmul.f32 %v1385, %v2202
  %v2205 = vmul.f32 %v1389, %v2198
  %v2206 = vmul.f32 %v1391, %v2202
  %v2207 = vmul.f32 %v1395, %v2198
  %v2208 = vmul.f32 %v1397, %v2202
  %v2209 = vmul.f32 %v1401, %v2198
  %v2210 = vmul.f32 %v1403, %v2202
  %v2211 = vmul.f32 %v1407, %v2198
  %v2212 = vmul.f32 %v1409, %v2202
  %v2213 = vmul.f32 %v1413, %v2198
  %v2214 = vmul.f32 %v1415, %v2202
  %v2215 = vmul.f32 %v1419, %v2198
  %v2216 = vmul.f32 %v1421, %v2202
  %v2217 = vmul.f32 %v1425, %v2198
  %v2218 = vmul.f32 %v1427, %v2202
  %v2219 = vlaneseq
  %v2220 = vshrl.u32 %v2219, 7
  %v2221 = vsub.s32 1, %v2220
  %v2222 = vrot.slane %v2191, %v2221
  %v2223 = vlaneseq
  %v2224 = vshrl.u32 %v2223, 7
  %v2225 = vsub.s32 1, %v2224
  %v2226 = vrot.slane %v2193, %v2225
  %v2227 = vadd.f32 %v2203, %v2222
  %v2228 = vadd.f32 %v2204, %v2226
  %v2229 = vadd.f32 %v2205, %v2222
  %v2230 = vadd.f32 %v2206, %v2226
  %v2231 = vadd.f32 %v2207, %v2222
  %v2232 = vadd.f32 %v2208, %v2226
  %v2233 = vadd.f32 %v2209, %v2222
  %v2234 = vadd.f32 %v2210, %v2226
  %v2235 = vadd.f32 %v2211, %v2222
  %v2236 = vadd.f32 %v2212, %v2226
  %v2237 = vadd.f32 %v2213, %v2222
  %v2238 = vadd.f32 %v2214, %v2226
  %v2239 = vadd.f32 %v2215, %v2222
  %v2240 = vadd.f32 %v2216, %v2226
  %v2241 = vadd.f32 %v2217, %v2222
  %v2242 = vadd.f32 %v2218, %v2226
  %v2243 = vmax.f32 %v2227, 0.0
  %v2244 = vmax.f32 %v2228, 0.0
  %v2245 = vmax.f32 %v2229, 0.0
  %v2246 = vmax.f32 %v2230, 0.0
  %v2247 = vmax.f32 %v2231, 0.0
  %v2248 = vmax.f32 %v2232, 0.0
  %v2249 = vmax.f32 %v2233, 0.0
  %v2250 = vmax.f32 %v2234, 0.0
  %v2251 = vmax.f32 %v2235, 0.0
  %v2252 = vmax.f32 %v2236, 0.0
  %v2253 = vmax.f32 %v2237, 0.0
  %v2254 = vmax.f32 %v2238, 0.0
  %v2255 = vmax.f32 %v2239, 0.0
  %v2256 = vmax.f32 %v2240, 0.0
  %v2257 = vmax.f32 %v2241, 0.0
  %v2258 = vmax.f32 %v2242, 0.0
  %2259 = vst [vmem:[%s5] sm:$0xff] %v2243
  %2260 = vst [vmem:[%s5 + $0x8] sm:$0xff] %v2244
  %2261 = vst [vmem:[%s5 + $0x10] sm:$0xff] %v2245
  %2262 = vst [vmem:[%s5 + $0x18] sm:$0xff] %v2246
  %2263 = vst [vmem:[%s5 + $0x20] sm:$0xff] %v2247
  %2264 = vst [vmem:[%s5 + $0x28] sm:$0xff] %v2248
  %2265 = vst [vmem:[%s5 + $0x30] sm:$0xff] %v2249
  %2266 = vst [vmem:[%s5 + $0x38] sm:$0xff] %v2250
  %2267 = vst [vmem:[%s5 + $0x40] sm:$0xff] %v2251
  %2268 = vst [vmem:[%s5 + $0x48] sm:$0xff] %v2252
  %2269 = vst [vmem:[%s5 + $0x50] sm:$0xff] %v2253
  %2270 = vst [vmem:[%s5 + $0x58] sm:$0xff] %v2254
  %2271 = vst [vmem:[%s5 + $0x60] sm:$0xff] %v2255
  %2272 = vst [vmem:[%s5 + $0x68] sm:$0xff] %v2256
  %2273 = vst [vmem:[%s5 + $0x70] sm:$0xff] %v2257
  %2274 = vst [vmem:[%s5 + $0x78] sm:$0xff] %v2258
  // Predicated region
  $region22: #{up_forward.1} parent=0 // pred_check
    _
  $region23: #{up_forward.1} parent=0 // pred_check_branch
    %2276 = sbr.rel (0) target = $region25
  $region24: #{up_forward.1} parent=0 // pred_region
    _
  $region25: #{up_forward.1} parent=0 // pred_fallthru
    _
  // Predicated region
  $region26: #{up_forward.1} parent=0 // pred_check
    _
  $region27: #{up_forward.1} parent=0 // pred_check_branch
    %2278 = sbr.rel (0) target = $region29
  $region28: #{up_forward.1} parent=0 // pred_region
    _
  $region29: #{up_forward.1} parent=0 // pred_fallthru
    _

</llo_original>
